<compile_context>
chip_gen: v7x
topology: tpu7x:2x2x1
jax: 0.10.0
libtpu: 0.0.40
codegen_flags: <defaults>
</compile_context>

<pallas_src>
import functools

import jax
import jax.numpy as jnp
from jax.experimental import pallas as pl
from jax.experimental.pallas import tpu as pltpu

LANE = 128        # lane width: channel / K dims are padded to multiples of this
MAX_TM = 1024     # row-tile cap (sublanes); shrunk automatically to fit VMEM
MIN_TM = 8
EPS = 1e-5        # BatchNorm eps (PyTorch default)


def _cdiv(a, b):
    return (a + b - 1) // b


def _round_up(a, b):
    return _cdiv(a, b) * b


@functools.lru_cache(maxsize=None)
def _vmem_limits():
    """(vmem_limit_bytes, tile_budget_bytes) derived from physical VMEM.

    v5e/v6e (128 MiB) -> ~96 MiB limit; v7x (64 MiB) -> ~48 MiB limit, so larger
    v5e/v6e tile choices are never blindly reused on v7x."""
    try:
        cap = int(pltpu.get_tpu_info().vmem_capacity_bytes)
        if cap <= 0:
            raise ValueError
    except Exception:
        cap = 64 << 20                      # conservative fallback (v7x-sized)
    limit = min(cap * 3 // 4, 100 << 20)
    budget = limit * 3 // 5                 # share reserved for our tile buffers
    return limit, budget


# ----------------------------- Pallas kernels ------------------------------ #

def _conv_bn_stats_kernel(a_ref, w_ref, o_ref, sum_ref, sq_ref):
    """Fused conv-as-matmul + per-row-tile BatchNorm statistics.

    grid = (row_tiles, k_tiles). y accumulates over k directly in the resident
    output block; at the last K step the finished tile's per-channel sum /
    sum-of-squares is written into this row tile's PRIVATE stats block, so the
    row axis can be "parallel" (v7x megacore) without any race on the stats.
    """
    k = pl.program_id(1)

    @pl.when(k == 0)
    def _():
        o_ref[...] = jnp.zeros_like(o_ref)

    # bf16 inputs, f32 accumulation on the MXU.
    o_ref[...] += jnp.dot(a_ref[...], w_ref[...],
                          preferred_element_type=jnp.float32)

    @pl.when(k == pl.num_programs(1) - 1)
    def _():
        y = o_ref[...]
        sum_ref[...] = jnp.zeros_like(sum_ref)
        sq_ref[...] = jnp.zeros_like(sq_ref)
        sum_ref[0:1, :] = jnp.sum(y, axis=0, keepdims=True)
        sq_ref[0:1, :] = jnp.sum(y * y, axis=0, keepdims=True)


def _matmul_kernel(a_ref, w_ref, o_ref):
    """Stats-free conv-as-matmul (1x1 shortcut conv: its stats would be unused)."""
    k = pl.program_id(1)

    @pl.when(k == 0)
    def _():
        o_ref[...] = jnp.zeros_like(o_ref)

    o_ref[...] += jnp.dot(a_ref[...], w_ref[...],
                          preferred_element_type=jnp.float32)


def _bn_relu_kernel(y_ref, scale_ref, shift_ref, o_ref):
    # relu(y * scale + shift); f32 math (no bf16 VPU path on v5e), bf16 cast on
    # store so stage-2's matmul input is already in MXU dtype (halves a1 traffic).
    o_ref[...] = jnp.maximum(
        y_ref[...] * scale_ref[...] + shift_ref[...], 0.0).astype(o_ref.dtype)


def _bn_add_relu_kernel(y_ref, scale_ref, shift_ref, res_ref, o_ref):
    # relu(y * scale + shift + residual); f32 in/out, overwrites y in place.
    o_ref[...] = jnp.maximum(
        y_ref[...] * scale_ref[...] + shift_ref[...] + res_ref[...], 0.0)


# ----------------------------- tile selection ------------------------------- #

def _conv_vmem_bytes(tm, tk, cpad):
    # double-buffered bf16 LHS + bf16 weight + f32 output + (tiny) stats blocks
    return (2 * (tm * tk * 2) + 2 * (tk * cpad * 2)
            + 2 * (tm * cpad * 4) + 4 * (8 * cpad * 4))


def _pick_conv_tiles(m, kdim, cpad):
    """Return (tm, tk, nk, kpad, mpad).

    Prefers nk == 1 (constant weight block index -> one weight DMA total, weight
    stays VMEM-resident); shrinks the row tile first and only K-tiles (which
    re-fetches the weight once per row tile) as a last resort."""
    _, budget = _vmem_limits()
    k128 = _round_up(kdim, LANE)
    m8 = _round_up(m, 8)

    def balanced_tm(cap):
        ntiles = _cdiv(m8, cap)
        return _round_up(_cdiv(m8, ntiles), 8)

    tm = balanced_tm(min(MAX_TM, m8))
    tk = k128
    while _conv_vmem_bytes(tm, tk, cpad) > budget and tm > MIN_TM:
        tm = balanced_tm(max(MIN_TM, tm // 2))
    while _conv_vmem_bytes(tm, tk, cpad) > budget and tk > LANE:
        tk = max(LANE, _round_up(tk // 2, LANE))
    nk = _cdiv(k128, tk)
    tk = _round_up(_cdiv(k128, nk), LANE)
    kpad = tk * nk
    mpad = _cdiv(m8, tm) * tm
    return tm, tk, nk, kpad, mpad


# ------------------------------- wrappers ----------------------------------- #

def _conv_call(kernel, patches, w, tm, tk, with_stats):
    """patches: (mpad, kpad) bf16, w: (kpad, cpad) bf16 -> y (mpad, cpad) f32
    (+ per-row-tile channel sum / sumsq when with_stats)."""
    mpad, kpad = patches.shape
    cpad = w.shape[1]
    nt, nk = mpad // tm, kpad // tk
    vmem_limit, _ = _vmem_limits()

    y_struct = jax.ShapeDtypeStruct((mpad, cpad), jnp.float32)
    y_spec = pl.BlockSpec((tm, cpad), lambda i, k: (i, 0))
    if with_stats:
        st_struct = jax.ShapeDtypeStruct((nt * 8, cpad), jnp.float32)
        st_spec = pl.BlockSpec((8, cpad), lambda i, k: (i, 0))
        out_shape = (y_struct, st_struct, st_struct)
        out_specs = (y_spec, st_spec, st_spec)
    else:
        out_shape = y_struct
        out_specs = y_spec

    return pl.pallas_call(
        kernel,
        out_shape=out_shape,
        grid_spec=pltpu.PrefetchScalarGridSpec(
            num_scalar_prefetch=0,
            grid=(nt, nk),
            in_specs=[
                pl.BlockSpec((tm, tk), lambda i, k: (i, k)),
                pl.BlockSpec((tk, cpad), lambda i, k: (k, 0)),
            ],
            out_specs=out_specs,
        ),
        compiler_params=pltpu.CompilerParams(
            # Row tiles are fully independent (private stats blocks) -> "parallel"
            # (megacore-shardable on v7x); K is a reduction into the resident
            # output block -> "arbitrary".
            dimension_semantics=("parallel", "arbitrary"),
            vmem_limit_bytes=vmem_limit),
    )(patches, w)


def conv_bn_stats(patches, w, tm, tk):
    return _conv_call(_conv_bn_stats_kernel, patches, w, tm, tk, with_stats=True)


def conv_matmul(patches, w, tm, tk):
    return _conv_call(_matmul_kernel, patches, w, tm, tk, with_stats=False)


def _elementwise_call(kernel, y, *others, out_dtype, alias_y, tm):
    """Row-tiled fused element-wise pass.  `tm` must divide y's row count (callers
    pass the conv row tile, which does by construction)."""
    mpad, c = y.shape
    vmem_limit, budget = _vmem_limits()

    def _tile_bytes(t):
        b = 2 * t * c * (y.dtype.itemsize + jnp.dtype(out_dtype).itemsize)
        for o in others:
            if o.shape[0] != 1:
                b += 2 * t * c * o.dtype.itemsize
        return b

    te = tm
    while te > 8 and te % 16 == 0 and _tile_bytes(te) > budget:
        te //= 2

    in_specs = [pl.BlockSpec((te, c), lambda i: (i, 0))]
    for o in others:
        if o.shape[0] == 1:          # per-channel broadcast operand
            in_specs.append(pl.BlockSpec((1, c), lambda i: (0, 0)))
        else:
            in_specs.append(pl.BlockSpec((te, c), lambda i: (i, 0)))

    return pl.pallas_call(
        kernel,
        out_shape=jax.ShapeDtypeStruct((mpad, c), out_dtype),
        grid_spec=pltpu.PrefetchScalarGridSpec(
            num_scalar_prefetch=0,
            grid=(mpad // te,),
            in_specs=in_specs,
            out_specs=pl.BlockSpec((te, c), lambda i: (i, 0)),
        ),
        compiler_params=pltpu.CompilerParams(
            dimension_semantics=("parallel",),
            vmem_limit_bytes=vmem_limit),
        input_output_aliases={0: 0} if alias_y else {},
    )(y, *others)


def bn_relu(y, scale, shift, tm):
    # bf16 output (stage-2 matmul input); cannot alias the f32 y (dtype mismatch).
    return _elementwise_call(_bn_relu_kernel, y, scale, shift,
                             out_dtype=jnp.bfloat16, alias_y=False, tm=tm)


def bn_add_relu(y, scale, shift, res, tm):
    return _elementwise_call(_bn_add_relu_kernel, y, scale, shift, res,
                             out_dtype=jnp.float32, alias_y=True, tm=tm)


# --------------------------------- glue ------------------------------------ #

def _im2col_bf16(x_nhwc, k, stride, pad, kpad, mpad):
    """im2col directly into the bf16, row/K-padded layout the MXU kernel eats.

    K = kh*kw*cin uses the TRUE cin (no per-tap padding to 128); only the final
    flattened K axis is zero-padded once to a multiple of the lane width, and the
    bf16 cast happens on the tap slices (no separate pad/astype pass over the slab).
    """
    # TODO(synk): move im2col fully in-kernel (tap-axis reduction over shifted NHWC
    # windows) so the k*k-expanded slab is never materialized in HBM.
    n, h, w, c = x_nhwc.shape
    xp = jnp.pad(x_nhwc, ((0, 0), (pad, pad), (pad, pad), (0, 0)))
    ho = (h + 2 * pad - k) // stride + 1
    wo = (w + 2 * pad - k) // stride + 1
    cols = []
    for dy in range(k):
        for dx in range(k):
            cols.append(
                xp[:, dy:dy + stride * ho:stride, dx:dx + stride * wo:stride, :]
                .astype(jnp.bfloat16))
    patches = jnp.concatenate(cols, axis=-1).reshape(n * ho * wo, k * k * c)
    m, kdim = patches.shape
    patches = jnp.pad(patches, ((0, mpad - m), (0, kpad - kdim)))
    return patches, ho, wo


def _prep_weight(w_hwio, kpad, cpad):
    """(kh, kw, cin, cout) -> (kpad, cpad) bf16, flattened-K / cout zero-padded."""
    kh, kw, cin, cout = w_hwio.shape
    wf = w_hwio.reshape(kh * kw * cin, cout)
    return jnp.pad(wf, ((0, kpad - kh * kw * cin),
                        (0, cpad - cout))).astype(jnp.bfloat16)


def _bn_coeffs(sum_rows, sq_rows, m, gamma, beta, cpad):
    """Fold training-mode BatchNorm into y*scale + shift (per-channel, f32).

    Padded rows of y are exactly zero (no pre-BN bias), so dividing the summed
    stats by the true m is exact. Padded channels get gamma=beta=0 -> output 0.
    """
    # TODO(synk): switch to a shifted two-pass variance if f32 cancellation in
    # E[y^2]-E[y]^2 ever becomes a precision issue for large activations.
    gamma = jnp.pad(gamma, (0, cpad - gamma.shape[0])).reshape(1, cpad)
    beta = jnp.pad(beta, (0, cpad - beta.shape[0])).reshape(1, cpad)
    s = jnp.sum(sum_rows, axis=0, keepdims=True)
    q = jnp.sum(sq_rows, axis=0, keepdims=True)
    mean = s / m
    var = jnp.maximum(q / m - mean * mean, 0.0)        # biased variance
    scale = gamma * jax.lax.rsqrt(var + EPS)
    shift = beta - mean * scale
    return scale, shift


def residual_forward(x_nchw, params, use_1x1conv, strides, paddings):
    x = jnp.transpose(x_nchw, (0, 2, 3, 1)).astype(jnp.float32)       # NHWC
    n, h, w, cin = x.shape
    cout = params["gamma1"].shape[0]
    cpad = _round_up(cout, LANE)

    # ---- stage 1: conv1 -> bn1 -> relu (conv + BN stats fused; bias dropped,
    #      it cancels exactly inside BatchNorm) ----
    ho1 = (h + 2 * paddings - 3) // strides + 1
    wo1 = (w + 2 * paddings - 3) // strides + 1
    m1 = n * ho1 * wo1
    tm1, tk1, _, kpad1, mpad1 = _pick_conv_tiles(m1, 9 * cin, cpad)
    p1, _, _ = _im2col_bf16(x, 3, strides, paddings, kpad1, mpad1)
    y1, s1, q1 = conv_bn_stats(p1, _prep_weight(params["w1"], kpad1, cpad), tm1, tk1)
    scale1, shift1 = _bn_coeffs(s1, q1, m1, params["gamma1"], params["beta1"], cpad)
    a1 = bn_relu(y1, scale1, shift1, tm1)                     # bf16 (mpad1, cpad)
    a1 = a1[:m1, :cout].reshape(n, ho1, wo1, cout)            # true channels only

    # ---- stage 2: conv2 -> bn2 (residual add + final ReLU fused below) ----
    ho2 = ho1 + 2 * paddings - 2
    wo2 = wo1 + 2 * paddings - 2
    m2 = n * ho2 * wo2
    tm2, tk2, _, kpad2, mpad2 = _pick_conv_tiles(m2, 9 * cout, cpad)
    p2, _, _ = _im2col_bf16(a1, 3, 1, paddings, kpad2, mpad2)
    y2, s2, q2 = conv_bn_stats(p2, _prep_weight(params["w2"], kpad2, cpad), tm2, tk2)
    scale2, shift2 = _bn_coeffs(s2, q2, m2, params["gamma2"], params["beta2"], cpad)

    # ---- shortcut ----
    if use_1x1conv:
        xs = x[:, ::strides, ::strides, :]                    # 1x1 conv = subsample
        assert n * xs.shape[1] * xs.shape[2] == m2, "residual shapes must match"
        kpad_sc = _round_up(cin, LANE)
        psc = jnp.pad(xs.reshape(m2, cin).astype(jnp.bfloat16),
                      ((0, mpad2 - m2), (0, kpad_sc - cin)))
        # Stats-free matmul; reuse stage-2's row tiling so the output already has
        # mpad2 rows (no extra pad pass over the residual stream).
        sc = conv_matmul(psc, _prep_weight(params["w3"], kpad_sc, cpad),
                         tm2, kpad_sc)                        # (mpad2, cpad) f32
        # conv3 has no BatchNorm after it, so its bias matters; fold it into the
        # stage-2 shift instead of adding a bias stream inside the matmul kernel.
        shift2 = shift2 + jnp.pad(params["b3"], (0, cpad - cout)).reshape(1, cpad)
    else:
        assert strides == 1 and cin == cout and n * h * w == m2, (
            "identity shortcut requires stride 1 and matching shapes")
        sc = jnp.pad(x.reshape(n * h * w, cin),
                     ((0, mpad2 - m2), (0, cpad - cin)))      # single pad pass

    # ---- bn2 apply + residual add + final relu, one fused f32 pass (in place) ----
    out = bn_add_relu(y2, scale2, shift2, sc, tm2)
    out = out[:m2, :cout].reshape(n, ho2, wo2, cout)
    return jnp.transpose(out, (0, 3, 1, 2))                   # NCHW


# ------------------------------ reference ----------------------------------- #

def ref_forward(x_nchw, params, use_1x1conv, strides, paddings):
    """Pure-XLA reference matching the PyTorch module (training-mode BN).
    Conv inputs/weights cast to bf16 with f32 accumulation so the check is
    apples-to-apples against the bf16-MXU Pallas path."""
    x = jnp.transpose(x_nchw, (0, 2, 3, 1)).astype(jnp.float32)

    def conv(xx, w, b, stride, pad):
        y = jax.lax.conv_general_dilated(
            xx.astype(jnp.bfloat16), w.astype(jnp.bfloat16),
            (stride, stride), [(pad, pad), (pad, pad)],
            dimension_numbers=("NHWC", "HWIO", "NHWC"),
            preferred_element_type=jnp.float32)
        return y + b.reshape(1, 1, 1, -1)

    def bn(y, gamma, beta):
        mean = jnp.mean(y, axis=(0, 1, 2), keepdims=True)
        var = jnp.mean((y - mean) ** 2, axis=(0, 1, 2), keepdims=True)
        return (gamma.reshape(1, 1, 1, -1) * (y - mean) * jax.lax.rsqrt(var + EPS)
                + beta.reshape(1, 1, 1, -1))

    y = jax.nn.relu(bn(conv(x, params["w1"], params["b1"], strides, paddings),
                       params["gamma1"], params["beta1"]))
    y = bn(conv(y, params["w2"], params["b2"], 1, paddings),
           params["gamma2"], params["beta2"])
    sc = conv(x, params["w3"], params["b3"], strides, 0) if use_1x1conv else x
    return jnp.transpose(jax.nn.relu(y + sc), (0, 3, 1, 2))


# ----------------------------- param init ----------------------------------- #

def init_params(key, cin, cout, use_1x1conv):
    ks = jax.random.split(key, 10)
    p = {
        "w1": 0.1 * jax.random.normal(ks[0], (3, 3, cin, cout), jnp.float32),
        "b1": 0.05 * jax.random.normal(ks[1], (cout,), jnp.float32),
        "w2": 0.1 * jax.random.normal(ks[2], (3, 3, cout, cout), jnp.float32),
        "b2": 0.05 * jax.random.normal(ks[3], (cout,), jnp.float32),
        "gamma1": 1.0 + 0.1 * jax.random.normal(ks[4], (cout,), jnp.float32),
        "beta1": 0.1 * jax.random.normal(ks[5], (cout,), jnp.float32),
        "gamma2": 1.0 + 0.1 * jax.random.normal(ks[6], (cout,), jnp.float32),
        "beta2": 0.1 * jax.random.normal(ks[7], (cout,), jnp.float32),
    }
    if use_1x1conv:
        p["w3"] = 0.1 * jax.random.normal(ks[8], (1, 1, cin, cout), jnp.float32)
        p["b3"] = 0.05 * jax.random.normal(ks[9], (cout,), jnp.float32)
    return p


# --------------------------------- main -------------------------------------- #

if __name__ == "__main__":
    key = jax.random.PRNGKey(0)
    kx, kp1, kp2 = jax.random.split(key, 3)
    x = jax.random.normal(kx, (2, 4, 16, 16), jnp.float32)   # NCHW

    fwd = jax.jit(residual_forward,
                  static_argnames=("use_1x1conv", "strides", "paddings"))

    # config A: identity shortcut (input_channels == num_channels, stride 1)
    params_a = init_params(kp1, 4, 4, use_1x1conv=False)
    out_a = fwd(x, params_a, use_1x1conv=False, strides=1, paddings=1)
    ref_a = ref_forward(x, params_a, False, 1, 1)

    # config B: 1x1-conv shortcut, stride 2, channel expansion 4 -> 8
    params_b = init_params(kp2, 4, 8, use_1x1conv=True)
    out_b = fwd(x, params_b, use_1x1conv=True, strides=2, paddings=1)
    ref_b = ref_forward(x, params_b, True, 2, 1)

    jax.block_until_ready((out_a, out_b, ref_a, ref_b))
    assert out_a.shape == (2, 4, 16, 16), out_a.shape
    assert out_b.shape == (2, 8, 8, 8), out_b.shape
    # Both paths run the convs with bf16 inputs / f32 accumulation; 1e-2 tolerance
    # covers bf16 double-rounding of the stage-1 activation between the two paths.
    assert jnp.allclose(out_a, ref_a, atol=1e-2, rtol=1e-2), (
        float(jnp.max(jnp.abs(out_a - ref_a))))
    assert jnp.allclose(out_b, ref_b, atol=1e-2, rtol=1e-2), (
        float(jnp.max(jnp.abs(out_b - ref_b))))
    print("KERNEL_OK")
</pallas_src>

<mosaic_0001>
module attributes {stable_mosaic.version = 11 : i64} {
  func.func @_conv_bn_stats_kernel(%arg0: i32, %arg1: i32, %arg2: memref<512x128xbf16, #tpu.memory_space<vmem>>, %arg3: memref<128x128xbf16, #tpu.memory_space<vmem>>, %arg4: memref<512x128xf32, #tpu.memory_space<vmem>>, %arg5: memref<8x128xf32, #tpu.memory_space<vmem>>, %arg6: memref<8x128xf32, #tpu.memory_space<vmem>>) attributes {dimension_semantics = [#tpu.dimension_semantics<parallel>, #tpu.dimension_semantics<arbitrary>], iteration_bounds = array<i64: 1, 1>, scalar_prefetch = 0 : i64, scratch_operands = 0 : i64, tpu.core_type = #tpu.core_type<tc>, window_params = [{transform_indices = @transform_0, window_bounds = array<i64: 512, 128>}, {transform_indices = @transform_1, window_bounds = array<i64: 128, 128>}, {transform_indices = @transform_2, window_bounds = array<i64: 512, 128>}, {transform_indices = @transform_3, window_bounds = array<i64: 8, 128>}, {transform_indices = @transform_4, window_bounds = array<i64: 8, 128>}]} {
    %c0_i32 = arith.constant 0 : i32
    %0 = arith.cmpi eq, %arg1, %c0_i32 : i32
    %1 = arith.extui %0 : i1 to i32
    %c0_i32_0 = arith.constant 0 : i32
    %2 = arith.cmpi ne, %1, %c0_i32_0 : i32
    scf.if %2 {
      %cst_10 = arith.constant 0.000000e+00 : f32
      %12 = vector.broadcast %cst_10 : f32 to vector<512x128xf32>
      %c0_11 = arith.constant 0 : index
      %c0_12 = arith.constant 0 : index
      %13 = vector.load %arg4[%c0_11, %c0_12] : memref<512x128xf32, #tpu.memory_space<vmem>>, vector<512x128xf32>
      tpu.vector_store %arg4[%c0_11, %c0_12], %12 {strides = array<i32>} : memref<512x128xf32, #tpu.memory_space<vmem>>, vector<512x128xf32>,
    } else {
    }
    %c0 = arith.constant 0 : index
    %c0_1 = arith.constant 0 : index
    %3 = vector.load %arg4[%c0, %c0_1] : memref<512x128xf32, #tpu.memory_space<vmem>>, vector<512x128xf32>
    %c0_2 = arith.constant 0 : index
    %c0_3 = arith.constant 0 : index
    %4 = vector.load %arg2[%c0_2, %c0_3] : memref<512x128xbf16, #tpu.memory_space<vmem>>, vector<512x128xbf16>
    %c0_4 = arith.constant 0 : index
    %c0_5 = arith.constant 0 : index
    %5 = vector.load %arg3[%c0_4, %c0_5] : memref<128x128xbf16, #tpu.memory_space<vmem>>, vector<128x128xbf16>
    %cst = arith.constant dense<0.000000e+00> : vector<512x128xf32>
    %6 = tpu.matmul %4, %5, %cst {dimension_numbers = #tpu.dot_dimension_numbers<[1], [0], [0], [1], [0, 0, 1, 1], [], []>} : vector<512x128xbf16>, vector<128x128xbf16>, vector<512x128xf32> -> vector<512x128xf32>
    %7 = arith.addf %3, %6 : vector<512x128xf32>
    %c0_6 = arith.constant 0 : index
    %c0_7 = arith.constant 0 : index
    %8 = vector.load %arg4[%c0_6, %c0_7] : memref<512x128xf32, #tpu.memory_space<vmem>>, vector<512x128xf32>
    tpu.vector_store %arg4[%c0_6, %c0_7], %7 {strides = array<i32>} : memref<512x128xf32, #tpu.memory_space<vmem>>, vector<512x128xf32>,
    %c0_i32_8 = arith.constant 0 : i32
    %9 = arith.cmpi eq, %arg1, %c0_i32_8 : i32
    %10 = arith.extui %9 : i1 to i32
    %c0_i32_9 = arith.constant 0 : i32
    %11 = arith.cmpi ne, %10, %c0_i32_9 : i32
    scf.if %11 {
      %c0_10 = arith.constant 0 : index
      %c0_11 = arith.constant 0 : index
      %12 = vector.load %arg4[%c0_10, %c0_11] : memref<512x128xf32, #tpu.memory_space<vmem>>, vector<512x128xf32>
      %cst_12 = arith.constant 0.000000e+00 : f32
      %13 = vector.broadcast %cst_12 : f32 to vector<8x128xf32>
      %c0_13 = arith.constant 0 : index
      %c0_14 = arith.constant 0 : index
      %14 = vector.load %arg5[%c0_13, %c0_14] : memref<8x128xf32, #tpu.memory_space<vmem>>, vector<8x128xf32>
      tpu.vector_store %arg5[%c0_13, %c0_14], %13 {strides = array<i32>} : memref<8x128xf32, #tpu.memory_space<vmem>>, vector<8x128xf32>,
      %cst_15 = arith.constant 0.000000e+00 : f32
      %15 = vector.broadcast %cst_15 : f32 to vector<8x128xf32>
      %c0_16 = arith.constant 0 : index
      %c0_17 = arith.constant 0 : index
      %16 = vector.load %arg6[%c0_16, %c0_17] : memref<8x128xf32, #tpu.memory_space<vmem>>, vector<8x128xf32>
      tpu.vector_store %arg6[%c0_16, %c0_17], %15 {strides = array<i32>} : memref<8x128xf32, #tpu.memory_space<vmem>>, vector<8x128xf32>,
      %cst_18 = arith.constant dense<0.000000e+00> : vector<128xf32>
      %17 = vector.multi_reduction <add>, %12, %cst_18 [0] : vector<512x128xf32> to vector<128xf32>
      %18 = vector.shape_cast %17 : vector<128xf32> to vector<1x128xf32>
      %c0_19 = arith.constant 0 : index
      %c0_20 = arith.constant 0 : index
      %19 = vector.load %arg5[%c0_19, %c0_20] : memref<8x128xf32, #tpu.memory_space<vmem>>, vector<1x128xf32>
      tpu.vector_store %arg5[%c0_19, %c0_20], %18 {strides = array<i32>} : memref<8x128xf32, #tpu.memory_space<vmem>>, vector<1x128xf32>,
      %20 = arith.mulf %12, %12 : vector<512x128xf32>
      %cst_21 = arith.constant dense<0.000000e+00> : vector<128xf32>
      %21 = vector.multi_reduction <add>, %20, %cst_21 [0] : vector<512x128xf32> to vector<128xf32>
      %22 = vector.shape_cast %21 : vector<128xf32> to vector<1x128xf32>
      %c0_22 = arith.constant 0 : index
      %c0_23 = arith.constant 0 : index
      %23 = vector.load %arg6[%c0_22, %c0_23] : memref<8x128xf32, #tpu.memory_space<vmem>>, vector<1x128xf32>
      tpu.vector_store %arg6[%c0_22, %c0_23], %22 {strides = array<i32>} : memref<8x128xf32, #tpu.memory_space<vmem>>, vector<1x128xf32>,
    } else {
    }
    return
  }
  func.func @transform_0(%arg0: i32, %arg1: i32) -> (i32, i32) {
    %c0_i32 = arith.constant 0 : i32
    return %arg0, %arg1 : i32, i32
  }
  func.func @transform_1(%arg0: i32, %arg1: i32) -> (i32, i32) {
    %c0_i32 = arith.constant 0 : i32
    %c0_i32_0 = arith.constant 0 : i32
    return %arg1, %c0_i32 : i32, i32
  }
  func.func @transform_2(%arg0: i32, %arg1: i32) -> (i32, i32) {
    %c0_i32 = arith.constant 0 : i32
    %c0_i32_0 = arith.constant 0 : i32
    return %arg0, %c0_i32 : i32, i32
  }
  func.func @transform_3(%arg0: i32, %arg1: i32) -> (i32, i32) {
    %c0_i32 = arith.constant 0 : i32
    %c0_i32_0 = arith.constant 0 : i32
    return %arg0, %c0_i32 : i32, i32
  }
  func.func @transform_4(%arg0: i32, %arg1: i32) -> (i32, i32) {
    %c0_i32 = arith.constant 0 : i32
    %c0_i32_0 = arith.constant 0 : i32
    return %arg0, %c0_i32 : i32, i32
  }
}

module attributes {stable_mosaic.version = 11 : i64} {
  func.func @_bn_relu_kernel(%arg0: i32, %arg1: memref<512x128xf32, #tpu.memory_space<vmem>>, %arg2: memref<1x128xf32, #tpu.memory_space<vmem>>, %arg3: memref<1x128xf32, #tpu.memory_space<vmem>>, %arg4: memref<512x128xbf16, #tpu.memory_space<vmem>>) attributes {dimension_semantics = [#tpu.dimension_semantics<parallel>], iteration_bounds = array<i64: 1>, scalar_prefetch = 0 : i64, scratch_operands = 0 : i64, tpu.core_type = #tpu.core_type<tc>, window_params = [{transform_indices = @transform_0, window_bounds = array<i64: 512, 128>}, {pipeline_mode = #tpu.pipeline_mode<synchronous>, transform_indices = @transform_1, window_bounds = array<i64: 1, 128>}, {pipeline_mode = #tpu.pipeline_mode<synchronous>, transform_indices = @transform_2, window_bounds = array<i64: 1, 128>}, {transform_indices = @transform_3, window_bounds = array<i64: 512, 128>}]} {
    %c0 = arith.constant 0 : index
    %c0_0 = arith.constant 0 : index
    %0 = vector.load %arg1[%c0, %c0_0] : memref<512x128xf32, #tpu.memory_space<vmem>>, vector<512x128xf32>
    %c0_1 = arith.constant 0 : index
    %c0_2 = arith.constant 0 : index
    %1 = vector.load %arg2[%c0_1, %c0_2] : memref<1x128xf32, #tpu.memory_space<vmem>>, vector<1x128xf32>
    %2 = vector.broadcast %1 : vector<1x128xf32> to vector<512x128xf32>
    %3 = arith.mulf %0, %2 : vector<512x128xf32>
    %c0_3 = arith.constant 0 : index
    %c0_4 = arith.constant 0 : index
    %4 = vector.load %arg3[%c0_3, %c0_4] : memref<1x128xf32, #tpu.memory_space<vmem>>, vector<1x128xf32>
    %5 = vector.broadcast %4 : vector<1x128xf32> to vector<512x128xf32>
    %6 = arith.addf %3, %5 : vector<512x128xf32>
    %cst = arith.constant 0.000000e+00 : f32
    %7 = vector.broadcast %cst : f32 to vector<512x128xf32>
    %8 = arith.maximumf %6, %7 : vector<512x128xf32>
    %9 = arith.truncf %8 : vector<512x128xf32> to vector<512x128xbf16>
    %c0_5 = arith.constant 0 : index
    %c0_6 = arith.constant 0 : index
    %10 = vector.load %arg4[%c0_5, %c0_6] : memref<512x128xbf16, #tpu.memory_space<vmem>>, vector<512x128xbf16>
    tpu.vector_store %arg4[%c0_5, %c0_6], %9 {strides = array<i32>} : memref<512x128xbf16, #tpu.memory_space<vmem>>, vector<512x128xbf16>,
    return
  }
  func.func @transform_0(%arg0: i32) -> (i32, i32) {
    %c0_i32 = arith.constant 0 : i32
    %c0_i32_0 = arith.constant 0 : i32
    return %arg0, %c0_i32 : i32, i32
  }
  func.func @transform_1(%arg0: i32) -> (i32, i32) {
    %c0_i32 = arith.constant 0 : i32
    %c0_i32_0 = arith.constant 0 : i32
    %c0_i32_1 = arith.constant 0 : i32
    return %c0_i32, %c0_i32_0 : i32, i32
  }
  func.func @transform_2(%arg0: i32) -> (i32, i32) {
    %c0_i32 = arith.constant 0 : i32
    %c0_i32_0 = arith.constant 0 : i32
    %c0_i32_1 = arith.constant 0 : i32
    return %c0_i32, %c0_i32_0 : i32, i32
  }
  func.func @transform_3(%arg0: i32) -> (i32, i32) {
    %c0_i32 = arith.constant 0 : i32
    %c0_i32_0 = arith.constant 0 : i32
    return %arg0, %c0_i32 : i32, i32
  }
}

module attributes {stable_mosaic.version = 11 : i64} {
  func.func @_bn_add_relu_kernel(%arg0: i32, %arg1: memref<512x128xf32, #tpu.memory_space<vmem>>, %arg2: memref<1x128xf32, #tpu.memory_space<vmem>>, %arg3: memref<1x128xf32, #tpu.memory_space<vmem>>, %arg4: memref<512x128xf32, #tpu.memory_space<vmem>>, %arg5: memref<512x128xf32, #tpu.memory_space<vmem>>) attributes {dimension_semantics = [#tpu.dimension_semantics<parallel>], iteration_bounds = array<i64: 1>, scalar_prefetch = 0 : i64, scratch_operands = 0 : i64, tpu.core_type = #tpu.core_type<tc>, window_params = [{transform_indices = @transform_0, window_bounds = array<i64: 512, 128>}, {pipeline_mode = #tpu.pipeline_mode<synchronous>, transform_indices = @transform_1, window_bounds = array<i64: 1, 128>}, {pipeline_mode = #tpu.pipeline_mode<synchronous>, transform_indices = @transform_2, window_bounds = array<i64: 1, 128>}, {transform_indices = @transform_3, window_bounds = array<i64: 512, 128>}, {transform_indices = @transform_4, window_bounds = array<i64: 512, 128>}]} {
    %c0 = arith.constant 0 : index
    %c0_0 = arith.constant 0 : index
    %0 = vector.load %arg1[%c0, %c0_0] : memref<512x128xf32, #tpu.memory_space<vmem>>, vector<512x128xf32>
    %c0_1 = arith.constant 0 : index
    %c0_2 = arith.constant 0 : index
    %1 = vector.load %arg2[%c0_1, %c0_2] : memref<1x128xf32, #tpu.memory_space<vmem>>, vector<1x128xf32>
    %2 = vector.broadcast %1 : vector<1x128xf32> to vector<512x128xf32>
    %3 = arith.mulf %0, %2 : vector<512x128xf32>
    %c0_3 = arith.constant 0 : index
    %c0_4 = arith.constant 0 : index
    %4 = vector.load %arg3[%c0_3, %c0_4] : memref<1x128xf32, #tpu.memory_space<vmem>>, vector<1x128xf32>
    %5 = vector.broadcast %4 : vector<1x128xf32> to vector<512x128xf32>
    %6 = arith.addf %3, %5 : vector<512x128xf32>
    %c0_5 = arith.constant 0 : index
    %c0_6 = arith.constant 0 : index
    %7 = vector.load %arg4[%c0_5, %c0_6] : memref<512x128xf32, #tpu.memory_space<vmem>>, vector<512x128xf32>
    %8 = arith.addf %6, %7 : vector<512x128xf32>
    %cst = arith.constant 0.000000e+00 : f32
    %9 = vector.broadcast %cst : f32 to vector<512x128xf32>
    %10 = arith.maximumf %8, %9 : vector<512x128xf32>
    %c0_7 = arith.constant 0 : index
    %c0_8 = arith.constant 0 : index
    %11 = vector.load %arg5[%c0_7, %c0_8] : memref<512x128xf32, #tpu.memory_space<vmem>>, vector<512x128xf32>
    tpu.vector_store %arg5[%c0_7, %c0_8], %10 {strides = array<i32>} : memref<512x128xf32, #tpu.memory_space<vmem>>, vector<512x128xf32>,
    return
  }
  func.func @transform_0(%arg0: i32) -> (i32, i32) {
    %c0_i32 = arith.constant 0 : i32
    %c0_i32_0 = arith.constant 0 : i32
    return %arg0, %c0_i32 : i32, i32
  }
  func.func @transform_1(%arg0: i32) -> (i32, i32) {
    %c0_i32 = arith.constant 0 : i32
    %c0_i32_0 = arith.constant 0 : i32
    %c0_i32_1 = arith.constant 0 : i32
    return %c0_i32, %c0_i32_0 : i32, i32
  }
  func.func @transform_2(%arg0: i32) -> (i32, i32) {
    %c0_i32 = arith.constant 0 : i32
    %c0_i32_0 = arith.constant 0 : i32
    %c0_i32_1 = arith.constant 0 : i32
    return %c0_i32, %c0_i32_0 : i32, i32
  }
  func.func @transform_3(%arg0: i32) -> (i32, i32) {
    %c0_i32 = arith.constant 0 : i32
    %c0_i32_0 = arith.constant 0 : i32
    return %arg0, %c0_i32 : i32, i32
  }
  func.func @transform_4(%arg0: i32) -> (i32, i32) {
    %c0_i32 = arith.constant 0 : i32
    %c0_i32_0 = arith.constant 0 : i32
    return %arg0, %c0_i32 : i32, i32
  }
}

</mosaic_0001>

<llo_original>
// kernel: residual_forward.5
$region0: #{residual_forward.5}
  #allocation0 [shape = 'u32[]', space=smem, size = 0x4, offset = 0x4, fixed_abs, tag = 'smem constant byte address 0x4 - core index']
  #allocation1 [shape = 'u32[144,128]{1,0:T(1,128)}', space=vmem, size = 0x12000, scoped, tag = 'internal scratch']
  %s0 = inlined_call_operand.vmem [shape: f32[512,128], index: 0, kind: input, shape index: {}]
  %s1 = inlined_call_operand.vmem [shape: f32[1,128], index: 1, kind: input, shape index: {}]
  %s2 = inlined_call_operand.vmem [shape: f32[1,128], index: 2, kind: input, shape index: {}]
  %s3 = inlined_call_operand.vmem [shape: bf16[512,128], index: 3, kind: output, shape index: {}]
  %s4 = sld [smem:[#allocation0]]
  $region22: #{residual_forward.5} parent=0
    _
  %s6 = ssub.s32 1, %s4
  %s7 = scalar_select 0, %s6, %s4
  // Predicated region
  $region2: #{residual_forward.5} parent=0 // pred_check
    _
  $region3: #{residual_forward.5} parent=0 // pred_check_branch
    %9 = sbr.rel (0) target = $region5
  $region4: #{residual_forward.5} parent=0 // pred_region
    _
  $region5: #{residual_forward.5} parent=0 // pred_fallthru
    _
  // Predicated region
  $region6: #{residual_forward.5} parent=0 // pred_check
    _
  $region7: #{residual_forward.5} parent=0 // pred_check_branch
    %11 = sbr.rel (0) target = $region9
  $region8: #{residual_forward.5} parent=0 // pred_region
    _
  $region9: #{residual_forward.5} parent=0 // pred_fallthru
    _
  // Predicated region
  $region10: #{residual_forward.5} parent=0 // pred_check
    _
  $region11: #{residual_forward.5} parent=0 // pred_check_branch
    %13 = sbr.rel (0) target = $region13
  $region12: #{residual_forward.5} parent=0 // pred_region
    _
  $region13: #{residual_forward.5} parent=0 // pred_fallthru
    _
  %v14 = vld [vmem:[%s0] sm:$0xff]
  %v15 = vld [vmem:[%s0 + $0x8] sm:$0xff]
  %v16 = vld [vmem:[%s0 + $0x10] sm:$0xff]
  %v17 = vld [vmem:[%s0 + $0x18] sm:$0xff]
  %v18 = vld [vmem:[%s0 + $0x20] sm:$0xff]
  %v19 = vld [vmem:[%s0 + $0x28] sm:$0xff]
  %v20 = vld [vmem:[%s0 + $0x30] sm:$0xff]
  %v21 = vld [vmem:[%s0 + $0x38] sm:$0xff]
  %v22 = vld [vmem:[%s0 + $0x40] sm:$0xff]
  %v23 = vld [vmem:[%s0 + $0x48] sm:$0xff]
  %v24 = vld [vmem:[%s0 + $0x50] sm:$0xff]
  %v25 = vld [vmem:[%s0 + $0x58] sm:$0xff]
  %v26 = vld [vmem:[%s0 + $0x60] sm:$0xff]
  %v27 = vld [vmem:[%s0 + $0x68] sm:$0xff]
  %v28 = vld [vmem:[%s0 + $0x70] sm:$0xff]
  %v29 = vld [vmem:[%s0 + $0x78] sm:$0xff]
  %v30 = vld [vmem:[%s0 + $0x80] sm:$0xff]
  %v31 = vld [vmem:[%s0 + $0x88] sm:$0xff]
  %v32 = vld [vmem:[%s0 + $0x90] sm:$0xff]
  %v33 = vld [vmem:[%s0 + $0x98] sm:$0xff]
  %v34 = vld [vmem:[%s0 + $0xa0] sm:$0xff]
  %v35 = vld [vmem:[%s0 + $0xa8] sm:$0xff]
  %v36 = vld [vmem:[%s0 + $0xb0] sm:$0xff]
  %v37 = vld [vmem:[%s0 + $0xb8] sm:$0xff]
  %v38 = vld [vmem:[%s0 + $0xc0] sm:$0xff]
  %v39 = vld [vmem:[%s0 + $0xc8] sm:$0xff]
  %v40 = vld [vmem:[%s0 + $0xd0] sm:$0xff]
  %v41 = vld [vmem:[%s0 + $0xd8] sm:$0xff]
  %v42 = vld [vmem:[%s0 + $0xe0] sm:$0xff]
  %v43 = vld [vmem:[%s0 + $0xe8] sm:$0xff]
  %v44 = vld [vmem:[%s0 + $0xf0] sm:$0xff]
  %v45 = vld [vmem:[%s0 + $0xf8] sm:$0xff]
  %v46 = vld [vmem:[%s0 + $0x100] sm:$0xff]
  %v47 = vld [vmem:[%s0 + $0x108] sm:$0xff]
  %v48 = vld [vmem:[%s0 + $0x110] sm:$0xff]
  %v49 = vld [vmem:[%s0 + $0x118] sm:$0xff]
  %v50 = vld [vmem:[%s0 + $0x120] sm:$0xff]
  %v51 = vld [vmem:[%s0 + $0x128] sm:$0xff]
  %v52 = vld [vmem:[%s0 + $0x130] sm:$0xff]
  %v53 = vld [vmem:[%s0 + $0x138] sm:$0xff]
  %v54 = vld [vmem:[%s0 + $0x140] sm:$0xff]
  %v55 = vld [vmem:[%s0 + $0x148] sm:$0xff]
  %v56 = vld [vmem:[%s0 + $0x150] sm:$0xff]
  %v57 = vld [vmem:[%s0 + $0x158] sm:$0xff]
  %v58 = vld [vmem:[%s0 + $0x160] sm:$0xff]
  %v59 = vld [vmem:[%s0 + $0x168] sm:$0xff]
  %v60 = vld [vmem:[%s0 + $0x170] sm:$0xff]
  %v61 = vld [vmem:[%s0 + $0x178] sm:$0xff]
  %v62 = vld [vmem:[%s0 + $0x180] sm:$0xff]
  %v63 = vld [vmem:[%s0 + $0x188] sm:$0xff]
  %v64 = vld [vmem:[%s0 + $0x190] sm:$0xff]
  %v65 = vld [vmem:[%s0 + $0x198] sm:$0xff]
  %v66 = vld [vmem:[%s0 + $0x1a0] sm:$0xff]
  %v67 = vld [vmem:[%s0 + $0x1a8] sm:$0xff]
  %v68 = vld [vmem:[%s0 + $0x1b0] sm:$0xff]
  %v69 = vld [vmem:[%s0 + $0x1b8] sm:$0xff]
  %v70 = vld [vmem:[%s0 + $0x1c0] sm:$0xff]
  %v71 = vld [vmem:[%s0 + $0x1c8] sm:$0xff]
  %v72 = vld [vmem:[%s0 + $0x1d0] sm:$0xff]
  %v73 = vld [vmem:[%s0 + $0x1d8] sm:$0xff]
  %v74 = vld [vmem:[%s0 + $0x1e0] sm:$0xff]
  %v75 = vld [vmem:[%s0 + $0x1e8] sm:$0xff]
  %v76 = vld [vmem:[%s0 + $0x1f0] sm:$0xff]
  %v77 = vld [vmem:[%s0 + $0x1f8] sm:$0xff]
  %v78 = vld [vmem:[%s1] sm:$0x1]
  %v80 = vlaneseq
  %v81 = vshrl.u32 %v80, 7
  %v82 = vsub.s32 0, %v81
  %v83 = vrot.slane %v78, %v82
  %v85 = vmul.f32 %v14, %v83
  %v86 = vmul.f32 %v15, %v83
  %v87 = vmul.f32 %v16, %v83
  %v88 = vmul.f32 %v17, %v83
  %v89 = vmul.f32 %v18, %v83
  %v90 = vmul.f32 %v19, %v83
  %v91 = vmul.f32 %v20, %v83
  %v92 = vmul.f32 %v21, %v83
  %v93 = vmul.f32 %v22, %v83
  %v94 = vmul.f32 %v23, %v83
  %v95 = vmul.f32 %v24, %v83
  %v96 = vmul.f32 %v25, %v83
  %v97 = vmul.f32 %v26, %v83
  %v98 = vmul.f32 %v27, %v83
  %v99 = vmul.f32 %v28, %v83
  %v100 = vmul.f32 %v29, %v83
  %v101 = vmul.f32 %v30, %v83
  %v102 = vmul.f32 %v31, %v83
  %v103 = vmul.f32 %v32, %v83
  %v104 = vmul.f32 %v33, %v83
  %v105 = vmul.f32 %v34, %v83
  %v106 = vmul.f32 %v35, %v83
  %v107 = vmul.f32 %v36, %v83
  %v108 = vmul.f32 %v37, %v83
  %v109 = vmul.f32 %v38, %v83
  %v110 = vmul.f32 %v39, %v83
  %v111 = vmul.f32 %v40, %v83
  %v112 = vmul.f32 %v41, %v83
  %v113 = vmul.f32 %v42, %v83
  %v114 = vmul.f32 %v43, %v83
  %v115 = vmul.f32 %v44, %v83
  %v116 = vmul.f32 %v45, %v83
  %v117 = vmul.f32 %v46, %v83
  %v118 = vmul.f32 %v47, %v83
  %v119 = vmul.f32 %v48, %v83
  %v120 = vmul.f32 %v49, %v83
  %v121 = vmul.f32 %v50, %v83
  %v122 = vmul.f32 %v51, %v83
  %v123 = vmul.f32 %v52, %v83
  %v124 = vmul.f32 %v53, %v83
  %v125 = vmul.f32 %v54, %v83
  %v126 = vmul.f32 %v55, %v83
  %v127 = vmul.f32 %v56, %v83
  %v128 = vmul.f32 %v57, %v83
  %v129 = vmul.f32 %v58, %v83
  %v130 = vmul.f32 %v59, %v83
  %v131 = vmul.f32 %v60, %v83
  %v132 = vmul.f32 %v61, %v83
  %v133 = vmul.f32 %v62, %v83
  %v134 = vmul.f32 %v63, %v83
  %v135 = vmul.f32 %v64, %v83
  %v136 = vmul.f32 %v65, %v83
  %v137 = vmul.f32 %v66, %v83
  %v138 = vmul.f32 %v67, %v83
  %v139 = vmul.f32 %v68, %v83
  %v140 = vmul.f32 %v69, %v83
  %v141 = vmul.f32 %v70, %v83
  %v142 = vmul.f32 %v71, %v83
  %v143 = vmul.f32 %v72, %v83
  %v144 = vmul.f32 %v73, %v83
  %v145 = vmul.f32 %v74, %v83
  %v146 = vmul.f32 %v75, %v83
  %v147 = vmul.f32 %v76, %v83
  %v148 = vmul.f32 %v77, %v83
  %v149 = vld [vmem:[%s2] sm:$0x1]
  %v151 = vlaneseq
  %v152 = vshrl.u32 %v151, 7
  %v153 = vsub.s32 0, %v152
  %v154 = vrot.slane %v149, %v153
  %v156 = vadd.f32 %v85, %v154
  %v157 = vadd.f32 %v86, %v154
  %v158 = vadd.f32 %v87, %v154
  %v159 = vadd.f32 %v88, %v154
  %v160 = vadd.f32 %v89, %v154
  %v161 = vadd.f32 %v90, %v154
  %v162 = vadd.f32 %v91, %v154
  %v163 = vadd.f32 %v92, %v154
  %v164 = vadd.f32 %v93, %v154
  %v165 = vadd.f32 %v94, %v154
  %v166 = vadd.f32 %v95, %v154
  %v167 = vadd.f32 %v96, %v154
  %v168 = vadd.f32 %v97, %v154
  %v169 = vadd.f32 %v98, %v154
  %v170 = vadd.f32 %v99, %v154
  %v171 = vadd.f32 %v100, %v154
  %v172 = vadd.f32 %v101, %v154
  %v173 = vadd.f32 %v102, %v154
  %v174 = vadd.f32 %v103, %v154
  %v175 = vadd.f32 %v104, %v154
  %v176 = vadd.f32 %v105, %v154
  %v177 = vadd.f32 %v106, %v154
  %v178 = vadd.f32 %v107, %v154
  %v179 = vadd.f32 %v108, %v154
  %v180 = vadd.f32 %v109, %v154
  %v181 = vadd.f32 %v110, %v154
  %v182 = vadd.f32 %v111, %v154
  %v183 = vadd.f32 %v112, %v154
  %v184 = vadd.f32 %v113, %v154
  %v185 = vadd.f32 %v114, %v154
  %v186 = vadd.f32 %v115, %v154
  %v187 = vadd.f32 %v116, %v154
  %v188 = vadd.f32 %v117, %v154
  %v189 = vadd.f32 %v118, %v154
  %v190 = vadd.f32 %v119, %v154
  %v191 = vadd.f32 %v120, %v154
  %v192 = vadd.f32 %v121, %v154
  %v193 = vadd.f32 %v122, %v154
  %v194 = vadd.f32 %v123, %v154
  %v195 = vadd.f32 %v124, %v154
  %v196 = vadd.f32 %v125, %v154
  %v197 = vadd.f32 %v126, %v154
  %v198 = vadd.f32 %v127, %v154
  %v199 = vadd.f32 %v128, %v154
  %v200 = vadd.f32 %v129, %v154
  %v201 = vadd.f32 %v130, %v154
  %v202 = vadd.f32 %v131, %v154
  %v203 = vadd.f32 %v132, %v154
  %v204 = vadd.f32 %v133, %v154
  %v205 = vadd.f32 %v134, %v154
  %v206 = vadd.f32 %v135, %v154
  %v207 = vadd.f32 %v136, %v154
  %v208 = vadd.f32 %v137, %v154
  %v209 = vadd.f32 %v138, %v154
  %v210 = vadd.f32 %v139, %v154
  %v211 = vadd.f32 %v140, %v154
  %v212 = vadd.f32 %v141, %v154
  %v213 = vadd.f32 %v142, %v154
  %v214 = vadd.f32 %v143, %v154
  %v215 = vadd.f32 %v144, %v154
  %v216 = vadd.f32 %v145, %v154
  %v217 = vadd.f32 %v146, %v154
  %v218 = vadd.f32 %v147, %v154
  %v219 = vadd.f32 %v148, %v154
  %v220 = vmax.f32 %v156, 0.0
  %v221 = vmax.f32 %v157, 0.0
  %v222 = vmax.f32 %v158, 0.0
  %v223 = vmax.f32 %v159, 0.0
  %v224 = vmax.f32 %v160, 0.0
  %v225 = vmax.f32 %v161, 0.0
  %v226 = vmax.f32 %v162, 0.0
  %v227 = vmax.f32 %v163, 0.0
  %v228 = vmax.f32 %v164, 0.0
  %v229 = vmax.f32 %v165, 0.0
  %v230 = vmax.f32 %v166, 0.0
  %v231 = vmax.f32 %v167, 0.0
  %v232 = vmax.f32 %v168, 0.0
  %v233 = vmax.f32 %v169, 0.0
  %v234 = vmax.f32 %v170, 0.0
  %v235 = vmax.f32 %v171, 0.0
  %v236 = vmax.f32 %v172, 0.0
  %v237 = vmax.f32 %v173, 0.0
  %v238 = vmax.f32 %v174, 0.0
  %v239 = vmax.f32 %v175, 0.0
  %v240 = vmax.f32 %v176, 0.0
  %v241 = vmax.f32 %v177, 0.0
  %v242 = vmax.f32 %v178, 0.0
  %v243 = vmax.f32 %v179, 0.0
  %v244 = vmax.f32 %v180, 0.0
  %v245 = vmax.f32 %v181, 0.0
  %v246 = vmax.f32 %v182, 0.0
  %v247 = vmax.f32 %v183, 0.0
  %v248 = vmax.f32 %v184, 0.0
  %v249 = vmax.f32 %v185, 0.0
  %v250 = vmax.f32 %v186, 0.0
  %v251 = vmax.f32 %v187, 0.0
  %v252 = vmax.f32 %v188, 0.0
  %v253 = vmax.f32 %v189, 0.0
  %v254 = vmax.f32 %v190, 0.0
  %v255 = vmax.f32 %v191, 0.0
  %v256 = vmax.f32 %v192, 0.0
  %v257 = vmax.f32 %v193, 0.0
  %v258 = vmax.f32 %v194, 0.0
  %v259 = vmax.f32 %v195, 0.0
  %v260 = vmax.f32 %v196, 0.0
  %v261 = vmax.f32 %v197, 0.0
  %v262 = vmax.f32 %v198, 0.0
  %v263 = vmax.f32 %v199, 0.0
  %v264 = vmax.f32 %v200, 0.0
  %v265 = vmax.f32 %v201, 0.0
  %v266 = vmax.f32 %v202, 0.0
  %v267 = vmax.f32 %v203, 0.0
  %v268 = vmax.f32 %v204, 0.0
  %v269 = vmax.f32 %v205, 0.0
  %v270 = vmax.f32 %v206, 0.0
  %v271 = vmax.f32 %v207, 0.0
  %v272 = vmax.f32 %v208, 0.0
  %v273 = vmax.f32 %v209, 0.0
  %v274 = vmax.f32 %v210, 0.0
  %v275 = vmax.f32 %v211, 0.0
  %v276 = vmax.f32 %v212, 0.0
  %v277 = vmax.f32 %v213, 0.0
  %v278 = vmax.f32 %v214, 0.0
  %v279 = vmax.f32 %v215, 0.0
  %v280 = vmax.f32 %v216, 0.0
  %v281 = vmax.f32 %v217, 0.0
  %v282 = vmax.f32 %v218, 0.0
  %v283 = vmax.f32 %v219, 0.0
  %v284 = vpack.c.bf16 %v221, %v220
  %v285 = vpack.c.bf16 %v223, %v222
  %v286 = vpack.c.bf16 %v225, %v224
  %v287 = vpack.c.bf16 %v227, %v226
  %v288 = vpack.c.bf16 %v229, %v228
  %v289 = vpack.c.bf16 %v231, %v230
  %v290 = vpack.c.bf16 %v233, %v232
  %v291 = vpack.c.bf16 %v235, %v234
  %v292 = vpack.c.bf16 %v237, %v236
  %v293 = vpack.c.bf16 %v239, %v238
  %v294 = vpack.c.bf16 %v241, %v240
  %v295 = vpack.c.bf16 %v243, %v242
  %v296 = vpack.c.bf16 %v245, %v244
  %v297 = vpack.c.bf16 %v247, %v246
  %v298 = vpack.c.bf16 %v249, %v248
  %v299 = vpack.c.bf16 %v251, %v250
  %v300 = vpack.c.bf16 %v253, %v252
  %v301 = vpack.c.bf16 %v255, %v254
  %v302 = vpack.c.bf16 %v257, %v256
  %v303 = vpack.c.bf16 %v259, %v258
  %v304 = vpack.c.bf16 %v261, %v260
  %v305 = vpack.c.bf16 %v263, %v262
  %v306 = vpack.c.bf16 %v265, %v264
  %v307 = vpack.c.bf16 %v267, %v266
  %v308 = vpack.c.bf16 %v269, %v268
  %v309 = vpack.c.bf16 %v271, %v270
  %v310 = vpack.c.bf16 %v273, %v272
  %v311 = vpack.c.bf16 %v275, %v274
  %v312 = vpack.c.bf16 %v277, %v276
  %v313 = vpack.c.bf16 %v279, %v278
  %v314 = vpack.c.bf16 %v281, %v280
  %v315 = vpack.c.bf16 %v283, %v282
  %v348 = vunpack.c.l.b16 %v284
  %v349 = vunpack.c.h.b16 %v284
  %v350 = vunpack.c.l.b16 %v285
  %v351 = vunpack.c.h.b16 %v285
  %v352 = vunpack.c.l.b16 %v286
  %v353 = vunpack.c.h.b16 %v286
  %v354 = vunpack.c.l.b16 %v287
  %v355 = vunpack.c.h.b16 %v287
  %v356 = vunpack.c.l.b16 %v288
  %v357 = vunpack.c.h.b16 %v288
  %v358 = vunpack.c.l.b16 %v289
  %v359 = vunpack.c.h.b16 %v289
  %v360 = vunpack.c.l.b16 %v290
  %v361 = vunpack.c.h.b16 %v290
  %v362 = vunpack.c.l.b16 %v291
  %v363 = vunpack.c.h.b16 %v291
  %v364 = vunpack.c.l.b16 %v292
  %v365 = vunpack.c.h.b16 %v292
  %v366 = vunpack.c.l.b16 %v293
  %v367 = vunpack.c.h.b16 %v293
  %v368 = vunpack.c.l.b16 %v294
  %v369 = vunpack.c.h.b16 %v294
  %v370 = vunpack.c.l.b16 %v295
  %v371 = vunpack.c.h.b16 %v295
  %v372 = vunpack.c.l.b16 %v296
  %v373 = vunpack.c.h.b16 %v296
  %v374 = vunpack.c.l.b16 %v297
  %v375 = vunpack.c.h.b16 %v297
  %v376 = vunpack.c.l.b16 %v298
  %v377 = vunpack.c.h.b16 %v298
  %v378 = vunpack.c.l.b16 %v299
  %v379 = vunpack.c.h.b16 %v299
  %v380 = vunpack.c.l.b16 %v300
  %v381 = vunpack.c.h.b16 %v300
  %v382 = vunpack.c.l.b16 %v301
  %v383 = vunpack.c.h.b16 %v301
  %v384 = vunpack.c.l.b16 %v302
  %v385 = vunpack.c.h.b16 %v302
  %v386 = vunpack.c.l.b16 %v303
  %v387 = vunpack.c.h.b16 %v303
  %v388 = vunpack.c.l.b16 %v304
  %v389 = vunpack.c.h.b16 %v304
  %v390 = vunpack.c.l.b16 %v305
  %v391 = vunpack.c.h.b16 %v305
  %v392 = vunpack.c.l.b16 %v306
  %v393 = vunpack.c.h.b16 %v306
  %v394 = vunpack.c.l.b16 %v307
  %v395 = vunpack.c.h.b16 %v307
  %v396 = vunpack.c.l.b16 %v308
  %v397 = vunpack.c.h.b16 %v308
  %v398 = vunpack.c.l.b16 %v309
  %v399 = vunpack.c.h.b16 %v309
  %v400 = vunpack.c.l.b16 %v310
  %v401 = vunpack.c.h.b16 %v310
  %v402 = vunpack.c.l.b16 %v311
  %v403 = vunpack.c.h.b16 %v311
  %v404 = vunpack.c.l.b16 %v312
  %v405 = vunpack.c.h.b16 %v312
  %v406 = vunpack.c.l.b16 %v313
  %v407 = vunpack.c.h.b16 %v313
  %v408 = vunpack.c.l.b16 %v314
  %v409 = vunpack.c.h.b16 %v314
  %v410 = vunpack.c.l.b16 %v315
  %v411 = vunpack.c.h.b16 %v315
  %v412 = vpack.c.b16 %v348, %v348
  %v413 = vpack.c.b16 %v349, %v349
  %v414 = vpack.c.b16 %v350, %v350
  %v415 = vpack.c.b16 %v351, %v351
  %v416 = vpack.c.b16 %v352, %v352
  %v417 = vpack.c.b16 %v353, %v353
  %v418 = vpack.c.b16 %v354, %v354
  %v419 = vpack.c.b16 %v355, %v355
  %v420 = vpack.c.b16 %v356, %v356
  %v421 = vpack.c.b16 %v357, %v357
  %v422 = vpack.c.b16 %v358, %v358
  %v423 = vpack.c.b16 %v359, %v359
  %v424 = vpack.c.b16 %v360, %v360
  %v425 = vpack.c.b16 %v361, %v361
  %v426 = vpack.c.b16 %v362, %v362
  %v427 = vpack.c.b16 %v363, %v363
  %v428 = vpack.c.b16 %v364, %v364
  %v429 = vpack.c.b16 %v365, %v365
  %v430 = vpack.c.b16 %v366, %v366
  %v431 = vpack.c.b16 %v367, %v367
  %v432 = vpack.c.b16 %v368, %v368
  %v433 = vpack.c.b16 %v369, %v369
  %v434 = vpack.c.b16 %v370, %v370
  %v435 = vpack.c.b16 %v371, %v371
  %v436 = vpack.c.b16 %v372, %v372
  %v437 = vpack.c.b16 %v373, %v373
  %v438 = vpack.c.b16 %v374, %v374
  %v439 = vpack.c.b16 %v375, %v375
  %v440 = vpack.c.b16 %v376, %v376
  %v441 = vpack.c.b16 %v377, %v377
  %v442 = vpack.c.b16 %v378, %v378
  %v443 = vpack.c.b16 %v379, %v379
  %v444 = vpack.c.b16 %v380, %v380
  %v445 = vpack.c.b16 %v381, %v381
  %v446 = vpack.c.b16 %v382, %v382
  %v447 = vpack.c.b16 %v383, %v383
  %v448 = vpack.c.b16 %v384, %v384
  %v449 = vpack.c.b16 %v385, %v385
  %v450 = vpack.c.b16 %v386, %v386
  %v451 = vpack.c.b16 %v387, %v387
  %v452 = vpack.c.b16 %v388, %v388
  %v453 = vpack.c.b16 %v389, %v389
  %v454 = vpack.c.b16 %v390, %v390
  %v455 = vpack.c.b16 %v391, %v391
  %v456 = vpack.c.b16 %v392, %v392
  %v457 = vpack.c.b16 %v393, %v393
  %v458 = vpack.c.b16 %v394, %v394
  %v459 = vpack.c.b16 %v395, %v395
  %v460 = vpack.c.b16 %v396, %v396
  %v461 = vpack.c.b16 %v397, %v397
  %v462 = vpack.c.b16 %v398, %v398
  %v463 = vpack.c.b16 %v399, %v399
  %v464 = vpack.c.b16 %v400, %v400
  %v465 = vpack.c.b16 %v401, %v401
  %v466 = vpack.c.b16 %v402, %v402
  %v467 = vpack.c.b16 %v403, %v403
  %v468 = vpack.c.b16 %v404, %v404
  %v469 = vpack.c.b16 %v405, %v405
  %v470 = vpack.c.b16 %v406, %v406
  %v471 = vpack.c.b16 %v407, %v407
  %v472 = vpack.c.b16 %v408, %v408
  %v473 = vpack.c.b16 %v409, %v409
  %v474 = vpack.c.b16 %v410, %v410
  %v475 = vpack.c.b16 %v411, %v411
  %540 = vst [vmem:[%s3] sm:$0xf] %v412
  %541 = vst [vmem:[%s3 + $0x4] sm:$0xf] %v413
  %542 = vst [vmem:[%s3 + $0x8] sm:$0xf] %v414
  %543 = vst [vmem:[%s3 + $0xc] sm:$0xf] %v415
  %544 = vst [vmem:[%s3 + $0x10] sm:$0xf] %v416
  %545 = vst [vmem:[%s3 + $0x14] sm:$0xf] %v417
  %546 = vst [vmem:[%s3 + $0x18] sm:$0xf] %v418
  %547 = vst [vmem:[%s3 + $0x1c] sm:$0xf] %v419
  %548 = vst [vmem:[%s3 + $0x20] sm:$0xf] %v420
  %549 = vst [vmem:[%s3 + $0x24] sm:$0xf] %v421
  %550 = vst [vmem:[%s3 + $0x28] sm:$0xf] %v422
  %551 = vst [vmem:[%s3 + $0x2c] sm:$0xf] %v423
  %552 = vst [vmem:[%s3 + $0x30] sm:$0xf] %v424
  %553 = vst [vmem:[%s3 + $0x34] sm:$0xf] %v425
  %554 = vst [vmem:[%s3 + $0x38] sm:$0xf] %v426
  %555 = vst [vmem:[%s3 + $0x3c] sm:$0xf] %v427
  %556 = vst [vmem:[%s3 + $0x40] sm:$0xf] %v428
  %557 = vst [vmem:[%s3 + $0x44] sm:$0xf] %v429
  %558 = vst [vmem:[%s3 + $0x48] sm:$0xf] %v430
  %559 = vst [vmem:[%s3 + $0x4c] sm:$0xf] %v431
  %560 = vst [vmem:[%s3 + $0x50] sm:$0xf] %v432
  %561 = vst [vmem:[%s3 + $0x54] sm:$0xf] %v433
  %562 = vst [vmem:[%s3 + $0x58] sm:$0xf] %v434
  %563 = vst [vmem:[%s3 + $0x5c] sm:$0xf] %v435
  %564 = vst [vmem:[%s3 + $0x60] sm:$0xf] %v436
  %565 = vst [vmem:[%s3 + $0x64] sm:$0xf] %v437
  %566 = vst [vmem:[%s3 + $0x68] sm:$0xf] %v438
  %567 = vst [vmem:[%s3 + $0x6c] sm:$0xf] %v439
  %568 = vst [vmem:[%s3 + $0x70] sm:$0xf] %v440
  %569 = vst [vmem:[%s3 + $0x74] sm:$0xf] %v441
  %570 = vst [vmem:[%s3 + $0x78] sm:$0xf] %v442
  %571 = vst [vmem:[%s3 + $0x7c] sm:$0xf] %v443
  %572 = vst [vmem:[%s3 + $0x80] sm:$0xf] %v444
  %573 = vst [vmem:[%s3 + $0x84] sm:$0xf] %v445
  %574 = vst [vmem:[%s3 + $0x88] sm:$0xf] %v446
  %575 = vst [vmem:[%s3 + $0x8c] sm:$0xf] %v447
  %576 = vst [vmem:[%s3 + $0x90] sm:$0xf] %v448
  %577 = vst [vmem:[%s3 + $0x94] sm:$0xf] %v449
  %578 = vst [vmem:[%s3 + $0x98] sm:$0xf] %v450
  %579 = vst [vmem:[%s3 + $0x9c] sm:$0xf] %v451
  %580 = vst [vmem:[%s3 + $0xa0] sm:$0xf] %v452
  %581 = vst [vmem:[%s3 + $0xa4] sm:$0xf] %v453
  %582 = vst [vmem:[%s3 + $0xa8] sm:$0xf] %v454
  %583 = vst [vmem:[%s3 + $0xac] sm:$0xf] %v455
  %584 = vst [vmem:[%s3 + $0xb0] sm:$0xf] %v456
  %585 = vst [vmem:[%s3 + $0xb4] sm:$0xf] %v457
  %586 = vst [vmem:[%s3 + $0xb8] sm:$0xf] %v458
  %587 = vst [vmem:[%s3 + $0xbc] sm:$0xf] %v459
  %588 = vst [vmem:[%s3 + $0xc0] sm:$0xf] %v460
  %589 = vst [vmem:[%s3 + $0xc4] sm:$0xf] %v461
  %590 = vst [vmem:[%s3 + $0xc8] sm:$0xf] %v462
  %591 = vst [vmem:[%s3 + $0xcc] sm:$0xf] %v463
  %592 = vst [vmem:[%s3 + $0xd0] sm:$0xf] %v464
  %593 = vst [vmem:[%s3 + $0xd4] sm:$0xf] %v465
  %594 = vst [vmem:[%s3 + $0xd8] sm:$0xf] %v466
  %595 = vst [vmem:[%s3 + $0xdc] sm:$0xf] %v467
  %596 = vst [vmem:[%s3 + $0xe0] sm:$0xf] %v468
  %597 = vst [vmem:[%s3 + $0xe4] sm:$0xf] %v469
  %598 = vst [vmem:[%s3 + $0xe8] sm:$0xf] %v470
  %599 = vst [vmem:[%s3 + $0xec] sm:$0xf] %v471
  %600 = vst [vmem:[%s3 + $0xf0] sm:$0xf] %v472
  %601 = vst [vmem:[%s3 + $0xf4] sm:$0xf] %v473
  %602 = vst [vmem:[%s3 + $0xf8] sm:$0xf] %v474
  %603 = vst [vmem:[%s3 + $0xfc] sm:$0xf] %v475
  // Predicated region
  $region14: #{residual_forward.5} parent=0 // pred_check
    _
  $region15: #{residual_forward.5} parent=0 // pred_check_branch
    %605 = sbr.rel (0) target = $region17
  $region16: #{residual_forward.5} parent=0 // pred_region
    _
  $region17: #{residual_forward.5} parent=0 // pred_fallthru
    _
  // Predicated region
  $region18: #{residual_forward.5} parent=0 // pred_check
    _
  $region19: #{residual_forward.5} parent=0 // pred_check_branch
    %607 = sbr.rel (0) target = $region21
  $region20: #{residual_forward.5} parent=0 // pred_region
    _
  $region21: #{residual_forward.5} parent=0 // pred_fallthru
    _

// kernel: residual_forward.4
$region0: #{residual_forward.4}
  #allocation0 [shape = 'u32[]', space=smem, size = 0x4, offset = 0x4, fixed_abs, tag = 'smem constant byte address 0x4 - core index']
  #allocation1 [shape = 'u32[144,128]{1,0:T(1,128)}', space=vmem, size = 0x12000, scoped, tag = 'internal scratch']
  %s0 = inlined_call_operand.vmem [shape: bf16[512,128], index: 0, kind: input, shape index: {}]
  %s1 = inlined_call_operand.vmem [shape: bf16[128,128], index: 1, kind: input, shape index: {}]
  %s2 = inlined_call_operand.vmem [shape: f32[512,128], index: 2, kind: output, shape index: {0}]
  %s3 = inlined_call_operand.vmem [shape: f32[8,128], index: 3, kind: output, shape index: {1}]
  %s4 = inlined_call_operand.vmem [shape: f32[8,128], index: 4, kind: output, shape index: {2}]
  %5 = xla_tuple %s2, %s3, %s4
  %s6 = sld [smem:[#allocation0]]
  $region42: #{residual_forward.4} parent=0
    _
  %s8 = ssub.s32 1, %s6
  %s9 = scalar_select 0, %s8, %s6
  // Predicated region
  $region2: #{residual_forward.4} parent=0 // pred_check
    _
  $region3: #{residual_forward.4} parent=0 // pred_check_branch
    %11 = sbr.rel (0) target = $region5
  $region4: #{residual_forward.4} parent=0 // pred_region
    _
  $region5: #{residual_forward.4} parent=0 // pred_fallthru
    _
  // Predicated region
  $region6: #{residual_forward.4} parent=0 // pred_check
    _
  $region7: #{residual_forward.4} parent=0 // pred_check_branch
    %13 = sbr.rel (0) target = $region9
  $region8: #{residual_forward.4} parent=0 // pred_region
    _
  $region9: #{residual_forward.4} parent=0 // pred_fallthru
    _
  %p15 = scmp.eq.s32.totalorder 0, 0
  // Predicated region
  $region10: #{residual_forward.4} parent=0 // pred_check
    %p16 = pneg %p15
  $region11: #{residual_forward.4} parent=0 // pred_check_branch
    %18 = sbr.rel (%p16) target = $region13
  $region12: #{residual_forward.4} parent=0 // pred_region
    %19 = vst [vmem:[%s2] sm:$0xff] 0.0
    %20 = vst [vmem:[%s2 + $0x8] sm:$0xff] 0.0
    %21 = vst [vmem:[%s2 + $0x10] sm:$0xff] 0.0
    %22 = vst [vmem:[%s2 + $0x18] sm:$0xff] 0.0
    %23 = vst [vmem:[%s2 + $0x20] sm:$0xff] 0.0
    %24 = vst [vmem:[%s2 + $0x28] sm:$0xff] 0.0
    %25 = vst [vmem:[%s2 + $0x30] sm:$0xff] 0.0
    %26 = vst [vmem:[%s2 + $0x38] sm:$0xff] 0.0
    %27 = vst [vmem:[%s2 + $0x40] sm:$0xff] 0.0
    %28 = vst [vmem:[%s2 + $0x48] sm:$0xff] 0.0
    %29 = vst [vmem:[%s2 + $0x50] sm:$0xff] 0.0
    %30 = vst [vmem:[%s2 + $0x58] sm:$0xff] 0.0
    %31 = vst [vmem:[%s2 + $0x60] sm:$0xff] 0.0
    %32 = vst [vmem:[%s2 + $0x68] sm:$0xff] 0.0
    %33 = vst [vmem:[%s2 + $0x70] sm:$0xff] 0.0
    %34 = vst [vmem:[%s2 + $0x78] sm:$0xff] 0.0
    %35 = vst [vmem:[%s2 + $0x80] sm:$0xff] 0.0
    %36 = vst [vmem:[%s2 + $0x88] sm:$0xff] 0.0
    %37 = vst [vmem:[%s2 + $0x90] sm:$0xff] 0.0
    %38 = vst [vmem:[%s2 + $0x98] sm:$0xff] 0.0
    %39 = vst [vmem:[%s2 + $0xa0] sm:$0xff] 0.0
    %40 = vst [vmem:[%s2 + $0xa8] sm:$0xff] 0.0
    %41 = vst [vmem:[%s2 + $0xb0] sm:$0xff] 0.0
    %42 = vst [vmem:[%s2 + $0xb8] sm:$0xff] 0.0
    %43 = vst [vmem:[%s2 + $0xc0] sm:$0xff] 0.0
    %44 = vst [vmem:[%s2 + $0xc8] sm:$0xff] 0.0
    %45 = vst [vmem:[%s2 + $0xd0] sm:$0xff] 0.0
    %46 = vst [vmem:[%s2 + $0xd8] sm:$0xff] 0.0
    %47 = vst [vmem:[%s2 + $0xe0] sm:$0xff] 0.0
    %48 = vst [vmem:[%s2 + $0xe8] sm:$0xff] 0.0
    %49 = vst [vmem:[%s2 + $0xf0] sm:$0xff] 0.0
    %50 = vst [vmem:[%s2 + $0xf8] sm:$0xff] 0.0
    %51 = vst [vmem:[%s2 + $0x100] sm:$0xff] 0.0
    %52 = vst [vmem:[%s2 + $0x108] sm:$0xff] 0.0
    %53 = vst [vmem:[%s2 + $0x110] sm:$0xff] 0.0
    %54 = vst [vmem:[%s2 + $0x118] sm:$0xff] 0.0
    %55 = vst [vmem:[%s2 + $0x120] sm:$0xff] 0.0
    %56 = vst [vmem:[%s2 + $0x128] sm:$0xff] 0.0
    %57 = vst [vmem:[%s2 + $0x130] sm:$0xff] 0.0
    %58 = vst [vmem:[%s2 + $0x138] sm:$0xff] 0.0
    %59 = vst [vmem:[%s2 + $0x140] sm:$0xff] 0.0
    %60 = vst [vmem:[%s2 + $0x148] sm:$0xff] 0.0
    %61 = vst [vmem:[%s2 + $0x150] sm:$0xff] 0.0
    %62 = vst [vmem:[%s2 + $0x158] sm:$0xff] 0.0
    %63 = vst [vmem:[%s2 + $0x160] sm:$0xff] 0.0
    %64 = vst [vmem:[%s2 + $0x168] sm:$0xff] 0.0
    %65 = vst [vmem:[%s2 + $0x170] sm:$0xff] 0.0
    %66 = vst [vmem:[%s2 + $0x178] sm:$0xff] 0.0
    %67 = vst [vmem:[%s2 + $0x180] sm:$0xff] 0.0
    %68 = vst [vmem:[%s2 + $0x188] sm:$0xff] 0.0
    %69 = vst [vmem:[%s2 + $0x190] sm:$0xff] 0.0
    %70 = vst [vmem:[%s2 + $0x198] sm:$0xff] 0.0
    %71 = vst [vmem:[%s2 + $0x1a0] sm:$0xff] 0.0
    %72 = vst [vmem:[%s2 + $0x1a8] sm:$0xff] 0.0
    %73 = vst [vmem:[%s2 + $0x1b0] sm:$0xff] 0.0
    %74 = vst [vmem:[%s2 + $0x1b8] sm:$0xff] 0.0
    %75 = vst [vmem:[%s2 + $0x1c0] sm:$0xff] 0.0
    %76 = vst [vmem:[%s2 + $0x1c8] sm:$0xff] 0.0
    %77 = vst [vmem:[%s2 + $0x1d0] sm:$0xff] 0.0
    %78 = vst [vmem:[%s2 + $0x1d8] sm:$0xff] 0.0
    %79 = vst [vmem:[%s2 + $0x1e0] sm:$0xff] 0.0
    %80 = vst [vmem:[%s2 + $0x1e8] sm:$0xff] 0.0
    %81 = vst [vmem:[%s2 + $0x1f0] sm:$0xff] 0.0
    %82 = vst [vmem:[%s2 + $0x1f8] sm:$0xff] 0.0
  $region13: #{residual_forward.4} parent=0 // pred_fallthru
    _
  %v83 = vld [vmem:[%s2] sm:$0xff]
  %v84 = vld [vmem:[%s2 + $0x8] sm:$0xff]
  %v85 = vld [vmem:[%s2 + $0x10] sm:$0xff]
  %v86 = vld [vmem:[%s2 + $0x18] sm:$0xff]
  %v87 = vld [vmem:[%s2 + $0x20] sm:$0xff]
  %v88 = vld [vmem:[%s2 + $0x28] sm:$0xff]
  %v89 = vld [vmem:[%s2 + $0x30] sm:$0xff]
  %v90 = vld [vmem:[%s2 + $0x38] sm:$0xff]
  %v91 = vld [vmem:[%s2 + $0x40] sm:$0xff]
  %v92 = vld [vmem:[%s2 + $0x48] sm:$0xff]
  %v93 = vld [vmem:[%s2 + $0x50] sm:$0xff]
  %v94 = vld [vmem:[%s2 + $0x58] sm:$0xff]
  %v95 = vld [vmem:[%s2 + $0x60] sm:$0xff]
  %v96 = vld [vmem:[%s2 + $0x68] sm:$0xff]
  %v97 = vld [vmem:[%s2 + $0x70] sm:$0xff]
  %v98 = vld [vmem:[%s2 + $0x78] sm:$0xff]
  %v99 = vld [vmem:[%s2 + $0x80] sm:$0xff]
  %v100 = vld [vmem:[%s2 + $0x88] sm:$0xff]
  %v101 = vld [vmem:[%s2 + $0x90] sm:$0xff]
  %v102 = vld [vmem:[%s2 + $0x98] sm:$0xff]
  %v103 = vld [vmem:[%s2 + $0xa0] sm:$0xff]
  %v104 = vld [vmem:[%s2 + $0xa8] sm:$0xff]
  %v105 = vld [vmem:[%s2 + $0xb0] sm:$0xff]
  %v106 = vld [vmem:[%s2 + $0xb8] sm:$0xff]
  %v107 = vld [vmem:[%s2 + $0xc0] sm:$0xff]
  %v108 = vld [vmem:[%s2 + $0xc8] sm:$0xff]
  %v109 = vld [vmem:[%s2 + $0xd0] sm:$0xff]
  %v110 = vld [vmem:[%s2 + $0xd8] sm:$0xff]
  %v111 = vld [vmem:[%s2 + $0xe0] sm:$0xff]
  %v112 = vld [vmem:[%s2 + $0xe8] sm:$0xff]
  %v113 = vld [vmem:[%s2 + $0xf0] sm:$0xff]
  %v114 = vld [vmem:[%s2 + $0xf8] sm:$0xff]
  %v115 = vld [vmem:[%s2 + $0x100] sm:$0xff]
  %v116 = vld [vmem:[%s2 + $0x108] sm:$0xff]
  %v117 = vld [vmem:[%s2 + $0x110] sm:$0xff]
  %v118 = vld [vmem:[%s2 + $0x118] sm:$0xff]
  %v119 = vld [vmem:[%s2 + $0x120] sm:$0xff]
  %v120 = vld [vmem:[%s2 + $0x128] sm:$0xff]
  %v121 = vld [vmem:[%s2 + $0x130] sm:$0xff]
  %v122 = vld [vmem:[%s2 + $0x138] sm:$0xff]
  %v123 = vld [vmem:[%s2 + $0x140] sm:$0xff]
  %v124 = vld [vmem:[%s2 + $0x148] sm:$0xff]
  %v125 = vld [vmem:[%s2 + $0x150] sm:$0xff]
  %v126 = vld [vmem:[%s2 + $0x158] sm:$0xff]
  %v127 = vld [vmem:[%s2 + $0x160] sm:$0xff]
  %v128 = vld [vmem:[%s2 + $0x168] sm:$0xff]
  %v129 = vld [vmem:[%s2 + $0x170] sm:$0xff]
  %v130 = vld [vmem:[%s2 + $0x178] sm:$0xff]
  %v131 = vld [vmem:[%s2 + $0x180] sm:$0xff]
  %v132 = vld [vmem:[%s2 + $0x188] sm:$0xff]
  %v133 = vld [vmem:[%s2 + $0x190] sm:$0xff]
  %v134 = vld [vmem:[%s2 + $0x198] sm:$0xff]
  %v135 = vld [vmem:[%s2 + $0x1a0] sm:$0xff]
  %v136 = vld [vmem:[%s2 + $0x1a8] sm:$0xff]
  %v137 = vld [vmem:[%s2 + $0x1b0] sm:$0xff]
  %v138 = vld [vmem:[%s2 + $0x1b8] sm:$0xff]
  %v139 = vld [vmem:[%s2 + $0x1c0] sm:$0xff]
  %v140 = vld [vmem:[%s2 + $0x1c8] sm:$0xff]
  %v141 = vld [vmem:[%s2 + $0x1d0] sm:$0xff]
  %v142 = vld [vmem:[%s2 + $0x1d8] sm:$0xff]
  %v143 = vld [vmem:[%s2 + $0x1e0] sm:$0xff]
  %v144 = vld [vmem:[%s2 + $0x1e8] sm:$0xff]
  %v145 = vld [vmem:[%s2 + $0x1f0] sm:$0xff]
  %v146 = vld [vmem:[%s2 + $0x1f8] sm:$0xff]
  %v147 = vld [vmem:[%s0] sm:$0xf]
  %v148 = vld [vmem:[%s0 + $0x4] sm:$0xf]
  %v149 = vld [vmem:[%s0 + $0x8] sm:$0xf]
  %v150 = vld [vmem:[%s0 + $0xc] sm:$0xf]
  %v151 = vld [vmem:[%s0 + $0x10] sm:$0xf]
  %v152 = vld [vmem:[%s0 + $0x14] sm:$0xf]
  %v153 = vld [vmem:[%s0 + $0x18] sm:$0xf]
  %v154 = vld [vmem:[%s0 + $0x1c] sm:$0xf]
  %v155 = vld [vmem:[%s0 + $0x20] sm:$0xf]
  %v156 = vld [vmem:[%s0 + $0x24] sm:$0xf]
  %v157 = vld [vmem:[%s0 + $0x28] sm:$0xf]
  %v158 = vld [vmem:[%s0 + $0x2c] sm:$0xf]
  %v159 = vld [vmem:[%s0 + $0x30] sm:$0xf]
  %v160 = vld [vmem:[%s0 + $0x34] sm:$0xf]
  %v161 = vld [vmem:[%s0 + $0x38] sm:$0xf]
  %v162 = vld [vmem:[%s0 + $0x3c] sm:$0xf]
  %v163 = vld [vmem:[%s0 + $0x40] sm:$0xf]
  %v164 = vld [vmem:[%s0 + $0x44] sm:$0xf]
  %v165 = vld [vmem:[%s0 + $0x48] sm:$0xf]
  %v166 = vld [vmem:[%s0 + $0x4c] sm:$0xf]
  %v167 = vld [vmem:[%s0 + $0x50] sm:$0xf]
  %v168 = vld [vmem:[%s0 + $0x54] sm:$0xf]
  %v169 = vld [vmem:[%s0 + $0x58] sm:$0xf]
  %v170 = vld [vmem:[%s0 + $0x5c] sm:$0xf]
  %v171 = vld [vmem:[%s0 + $0x60] sm:$0xf]
  %v172 = vld [vmem:[%s0 + $0x64] sm:$0xf]
  %v173 = vld [vmem:[%s0 + $0x68] sm:$0xf]
  %v174 = vld [vmem:[%s0 + $0x6c] sm:$0xf]
  %v175 = vld [vmem:[%s0 + $0x70] sm:$0xf]
  %v176 = vld [vmem:[%s0 + $0x74] sm:$0xf]
  %v177 = vld [vmem:[%s0 + $0x78] sm:$0xf]
  %v178 = vld [vmem:[%s0 + $0x7c] sm:$0xf]
  %v179 = vld [vmem:[%s0 + $0x80] sm:$0xf]
  %v180 = vld [vmem:[%s0 + $0x84] sm:$0xf]
  %v181 = vld [vmem:[%s0 + $0x88] sm:$0xf]
  %v182 = vld [vmem:[%s0 + $0x8c] sm:$0xf]
  %v183 = vld [vmem:[%s0 + $0x90] sm:$0xf]
  %v184 = vld [vmem:[%s0 + $0x94] sm:$0xf]
  %v185 = vld [vmem:[%s0 + $0x98] sm:$0xf]
  %v186 = vld [vmem:[%s0 + $0x9c] sm:$0xf]
  %v187 = vld [vmem:[%s0 + $0xa0] sm:$0xf]
  %v188 = vld [vmem:[%s0 + $0xa4] sm:$0xf]
  %v189 = vld [vmem:[%s0 + $0xa8] sm:$0xf]
  %v190 = vld [vmem:[%s0 + $0xac] sm:$0xf]
  %v191 = vld [vmem:[%s0 + $0xb0] sm:$0xf]
  %v192 = vld [vmem:[%s0 + $0xb4] sm:$0xf]
  %v193 = vld [vmem:[%s0 + $0xb8] sm:$0xf]
  %v194 = vld [vmem:[%s0 + $0xbc] sm:$0xf]
  %v195 = vld [vmem:[%s0 + $0xc0] sm:$0xf]
  %v196 = vld [vmem:[%s0 + $0xc4] sm:$0xf]
  %v197 = vld [vmem:[%s0 + $0xc8] sm:$0xf]
  %v198 = vld [vmem:[%s0 + $0xcc] sm:$0xf]
  %v199 = vld [vmem:[%s0 + $0xd0] sm:$0xf]
  %v200 = vld [vmem:[%s0 + $0xd4] sm:$0xf]
  %v201 = vld [vmem:[%s0 + $0xd8] sm:$0xf]
  %v202 = vld [vmem:[%s0 + $0xdc] sm:$0xf]
  %v203 = vld [vmem:[%s0 + $0xe0] sm:$0xf]
  %v204 = vld [vmem:[%s0 + $0xe4] sm:$0xf]
  %v205 = vld [vmem:[%s0 + $0xe8] sm:$0xf]
  %v206 = vld [vmem:[%s0 + $0xec] sm:$0xf]
  %v207 = vld [vmem:[%s0 + $0xf0] sm:$0xf]
  %v208 = vld [vmem:[%s0 + $0xf4] sm:$0xf]
  %v209 = vld [vmem:[%s0 + $0xf8] sm:$0xf]
  %v210 = vld [vmem:[%s0 + $0xfc] sm:$0xf]
  %v211 = vld [vmem:[%s1] sm:$0xf]
  %v212 = vld [vmem:[%s1 + $0x4] sm:$0xf]
  %v213 = vld [vmem:[%s1 + $0x8] sm:$0xf]
  %v214 = vld [vmem:[%s1 + $0xc] sm:$0xf]
  %v215 = vld [vmem:[%s1 + $0x10] sm:$0xf]
  %v216 = vld [vmem:[%s1 + $0x14] sm:$0xf]
  %v217 = vld [vmem:[%s1 + $0x18] sm:$0xf]
  %v218 = vld [vmem:[%s1 + $0x1c] sm:$0xf]
  %v219 = vld [vmem:[%s1 + $0x20] sm:$0xf]
  %v220 = vld [vmem:[%s1 + $0x24] sm:$0xf]
  %v221 = vld [vmem:[%s1 + $0x28] sm:$0xf]
  %v222 = vld [vmem:[%s1 + $0x2c] sm:$0xf]
  %v223 = vld [vmem:[%s1 + $0x30] sm:$0xf]
  %v224 = vld [vmem:[%s1 + $0x34] sm:$0xf]
  %v225 = vld [vmem:[%s1 + $0x38] sm:$0xf]
  %v226 = vld [vmem:[%s1 + $0x3c] sm:$0xf]
  %v291 = vunpack.c.l.b16 %v147
  %v292 = vunpack.c.l.b16 %v148
  %v293 = vunpack.c.l.b16 %v149
  %v294 = vunpack.c.l.b16 %v150
  %v295 = vunpack.c.l.b16 %v151
  %v296 = vunpack.c.l.b16 %v152
  %v297 = vunpack.c.l.b16 %v153
  %v298 = vunpack.c.l.b16 %v154
  %v299 = vunpack.c.l.b16 %v155
  %v300 = vunpack.c.l.b16 %v156
  %v301 = vunpack.c.l.b16 %v157
  %v302 = vunpack.c.l.b16 %v158
  %v303 = vunpack.c.l.b16 %v159
  %v304 = vunpack.c.l.b16 %v160
  %v305 = vunpack.c.l.b16 %v161
  %v306 = vunpack.c.l.b16 %v162
  %v307 = vunpack.c.l.b16 %v163
  %v308 = vunpack.c.l.b16 %v164
  %v309 = vunpack.c.l.b16 %v165
  %v310 = vunpack.c.l.b16 %v166
  %v311 = vunpack.c.l.b16 %v167
  %v312 = vunpack.c.l.b16 %v168
  %v313 = vunpack.c.l.b16 %v169
  %v314 = vunpack.c.l.b16 %v170
  %v315 = vunpack.c.l.b16 %v171
  %v316 = vunpack.c.l.b16 %v172
  %v317 = vunpack.c.l.b16 %v173
  %v318 = vunpack.c.l.b16 %v174
  %v319 = vunpack.c.l.b16 %v175
  %v320 = vunpack.c.l.b16 %v176
  %v321 = vunpack.c.l.b16 %v177
  %v322 = vunpack.c.l.b16 %v178
  %v323 = vunpack.c.l.b16 %v179
  %v324 = vunpack.c.l.b16 %v180
  %v325 = vunpack.c.l.b16 %v181
  %v326 = vunpack.c.l.b16 %v182
  %v327 = vunpack.c.l.b16 %v183
  %v328 = vunpack.c.l.b16 %v184
  %v329 = vunpack.c.l.b16 %v185
  %v330 = vunpack.c.l.b16 %v186
  %v331 = vunpack.c.l.b16 %v187
  %v332 = vunpack.c.l.b16 %v188
  %v333 = vunpack.c.l.b16 %v189
  %v334 = vunpack.c.l.b16 %v190
  %v335 = vunpack.c.l.b16 %v191
  %v336 = vunpack.c.l.b16 %v192
  %v337 = vunpack.c.l.b16 %v193
  %v338 = vunpack.c.l.b16 %v194
  %v339 = vunpack.c.l.b16 %v195
  %v340 = vunpack.c.l.b16 %v196
  %v341 = vunpack.c.l.b16 %v197
  %v342 = vunpack.c.l.b16 %v198
  %v343 = vunpack.c.l.b16 %v199
  %v344 = vunpack.c.l.b16 %v200
  %v345 = vunpack.c.l.b16 %v201
  %v346 = vunpack.c.l.b16 %v202
  %v347 = vunpack.c.l.b16 %v203
  %v348 = vunpack.c.l.b16 %v204
  %v349 = vunpack.c.l.b16 %v205
  %v350 = vunpack.c.l.b16 %v206
  %v351 = vunpack.c.l.b16 %v207
  %v352 = vunpack.c.l.b16 %v208
  %v353 = vunpack.c.l.b16 %v209
  %v354 = vunpack.c.l.b16 %v210
  %v355 = vpack.c.b16 %v292, %v291
  %v356 = vpack.c.b16 %v294, %v293
  %v357 = vpack.c.b16 %v296, %v295
  %v358 = vpack.c.b16 %v298, %v297
  %v359 = vpack.c.b16 %v300, %v299
  %v360 = vpack.c.b16 %v302, %v301
  %v361 = vpack.c.b16 %v304, %v303
  %v362 = vpack.c.b16 %v306, %v305
  %v363 = vpack.c.b16 %v308, %v307
  %v364 = vpack.c.b16 %v310, %v309
  %v365 = vpack.c.b16 %v312, %v311
  %v366 = vpack.c.b16 %v314, %v313
  %v367 = vpack.c.b16 %v316, %v315
  %v368 = vpack.c.b16 %v318, %v317
  %v369 = vpack.c.b16 %v320, %v319
  %v370 = vpack.c.b16 %v322, %v321
  %v371 = vpack.c.b16 %v324, %v323
  %v372 = vpack.c.b16 %v326, %v325
  %v373 = vpack.c.b16 %v328, %v327
  %v374 = vpack.c.b16 %v330, %v329
  %v375 = vpack.c.b16 %v332, %v331
  %v376 = vpack.c.b16 %v334, %v333
  %v377 = vpack.c.b16 %v336, %v335
  %v378 = vpack.c.b16 %v338, %v337
  %v379 = vpack.c.b16 %v340, %v339
  %v380 = vpack.c.b16 %v342, %v341
  %v381 = vpack.c.b16 %v344, %v343
  %v382 = vpack.c.b16 %v346, %v345
  %v383 = vpack.c.b16 %v348, %v347
  %v384 = vpack.c.b16 %v350, %v349
  %v385 = vpack.c.b16 %v352, %v351
  %v386 = vpack.c.b16 %v354, %v353
  %v435 = vunpack.c.l.b16 %v211
  %v436 = vunpack.c.l.b16 %v212
  %v437 = vunpack.c.l.b16 %v213
  %v438 = vunpack.c.l.b16 %v214
  %v439 = vunpack.c.l.b16 %v215
  %v440 = vunpack.c.l.b16 %v216
  %v441 = vunpack.c.l.b16 %v217
  %v442 = vunpack.c.l.b16 %v218
  %v443 = vunpack.c.l.b16 %v219
  %v444 = vunpack.c.l.b16 %v220
  %v445 = vunpack.c.l.b16 %v221
  %v446 = vunpack.c.l.b16 %v222
  %v447 = vunpack.c.l.b16 %v223
  %v448 = vunpack.c.l.b16 %v224
  %v449 = vunpack.c.l.b16 %v225
  %v450 = vunpack.c.l.b16 %v226
  %v451 = vpack.c.b16 %v436, %v435
  %v452 = vpack.c.b16 %v438, %v437
  %v453 = vpack.c.b16 %v440, %v439
  %v454 = vpack.c.b16 %v442, %v441
  %v455 = vpack.c.b16 %v444, %v443
  %v456 = vpack.c.b16 %v446, %v445
  %v457 = vpack.c.b16 %v448, %v447
  %v458 = vpack.c.b16 %v450, %v449
  %467 = vmatprep.subr.bf16.mxu0 0
  %468 = vmatpush1.bf16.msra.mxu0 %v451
  %469 = vmatprep.subr.bf16.mxu0 0
  %470 = vmatpush1.bf16.msra.mxu0 %v452
  %471 = vmatprep.subr.bf16.mxu0 0
  %472 = vmatpush1.bf16.msra.mxu0 %v453
  %473 = vmatprep.subr.bf16.mxu0 0
  %474 = vmatpush1.bf16.msra.mxu0 %v454
  %475 = vmatprep.subr.bf16.mxu0 0
  %476 = vmatpush1.bf16.msra.mxu0 %v455
  %477 = vmatprep.subr.bf16.mxu0 0
  %478 = vmatpush1.bf16.msra.mxu0 %v456
  %479 = vmatprep.subr.bf16.mxu0 0
  %480 = vmatpush1.bf16.msra.mxu0 %v457
  %481 = vmatprep.subr.bf16.mxu0 0
  %482 = vmatpush1.bf16.msra.mxu0 %v458
  %483 = vmatprep.subr.bf16.mxu0 0
  %484 = vmatpush1.bf16.msra.mxu0 0
  %485 = vmatprep.subr.bf16.mxu0 0
  %486 = vmatpush1.bf16.msra.mxu0 0
  %487 = vmatprep.subr.bf16.mxu0 0
  %488 = vmatpush1.bf16.msra.mxu0 0
  %489 = vmatprep.subr.bf16.mxu0 0
  %490 = vmatpush1.bf16.msra.mxu0 0
  %491 = vmatprep.subr.bf16.mxu0 0
  %492 = vmatpush1.bf16.msra.mxu0 0
  %493 = vmatprep.subr.bf16.mxu0 0
  %494 = vmatpush1.bf16.msra.mxu0 0
  %495 = vmatprep.subr.bf16.mxu0 0
  %496 = vmatpush1.bf16.msra.mxu0 0
  %497 = vmatprep.subr.bf16.mxu0 0
  %498 = vmatpush1.bf16.msra.mxu0 0
  %499 = vmatprep.mubr.bf16.mxu0 0
  %500 = vmatmul.mubr.bf16.gmra.mrb[0].mxu0 %v355
  %v501 = vpop.f32.mrb[0].mxu0
  %v502 = vadd.f32 0.0, %v501
  %v503 = vpop.f32.mrb[0].mxu0
  %v504 = vpop.f32.mrb[0].mxu0
  %v505 = vadd.f32 0.0, %v504
  %v506 = vpop.f32.mrb[0].mxu0
  %507 = vmatprep.mubr.bf16.mxu0 0
  %508 = vmatmul.mubr.bf16.gmra.mrb[0].mxu0 %v356
  %v509 = vpop.f32.mrb[0].mxu0
  %v510 = vadd.f32 0.0, %v509
  %v511 = vpop.f32.mrb[0].mxu0
  %v512 = vpop.f32.mrb[0].mxu0
  %v513 = vadd.f32 0.0, %v512
  %v514 = vpop.f32.mrb[0].mxu0
  %515 = vmatprep.mubr.bf16.mxu0 0
  %516 = vmatmul.mubr.bf16.gmra.mrb[0].mxu0 %v357
  %v517 = vpop.f32.mrb[0].mxu0
  %v518 = vadd.f32 0.0, %v517
  %v519 = vpop.f32.mrb[0].mxu0
  %v520 = vpop.f32.mrb[0].mxu0
  %v521 = vadd.f32 0.0, %v520
  %v522 = vpop.f32.mrb[0].mxu0
  %523 = vmatprep.mubr.bf16.mxu0 0
  %524 = vmatmul.mubr.bf16.gmra.mrb[0].mxu0 %v358
  %v525 = vpop.f32.mrb[0].mxu0
  %v526 = vadd.f32 0.0, %v525
  %v527 = vpop.f32.mrb[0].mxu0
  %v528 = vpop.f32.mrb[0].mxu0
  %v529 = vadd.f32 0.0, %v528
  %v530 = vpop.f32.mrb[0].mxu0
  %531 = vmatprep.mubr.bf16.mxu0 0
  %532 = vmatmul.mubr.bf16.gmra.mrb[0].mxu0 %v359
  %v533 = vpop.f32.mrb[0].mxu0
  %v534 = vadd.f32 0.0, %v533
  %v535 = vpop.f32.mrb[0].mxu0
  %v536 = vpop.f32.mrb[0].mxu0
  %v537 = vadd.f32 0.0, %v536
  %v538 = vpop.f32.mrb[0].mxu0
  %539 = vmatprep.mubr.bf16.mxu0 0
  %540 = vmatmul.mubr.bf16.gmra.mrb[0].mxu0 %v360
  %v541 = vpop.f32.mrb[0].mxu0
  %v542 = vadd.f32 0.0, %v541
  %v543 = vpop.f32.mrb[0].mxu0
  %v544 = vpop.f32.mrb[0].mxu0
  %v545 = vadd.f32 0.0, %v544
  %v546 = vpop.f32.mrb[0].mxu0
  %547 = vmatprep.mubr.bf16.mxu0 0
  %548 = vmatmul.mubr.bf16.gmra.mrb[0].mxu0 %v361
  %v549 = vpop.f32.mrb[0].mxu0
  %v550 = vadd.f32 0.0, %v549
  %v551 = vpop.f32.mrb[0].mxu0
  %v552 = vpop.f32.mrb[0].mxu0
  %v553 = vadd.f32 0.0, %v552
  %v554 = vpop.f32.mrb[0].mxu0
  %555 = vmatprep.mubr.bf16.mxu0 0
  %556 = vmatmul.mubr.bf16.gmra.mrb[0].mxu0 %v362
  %v557 = vpop.f32.mrb[0].mxu0
  %v558 = vadd.f32 0.0, %v557
  %v559 = vpop.f32.mrb[0].mxu0
  %v560 = vpop.f32.mrb[0].mxu0
  %v561 = vadd.f32 0.0, %v560
  %v562 = vpop.f32.mrb[0].mxu0
  %563 = vmatprep.mubr.bf16.mxu0 0
  %564 = vmatmul.mubr.bf16.gmra.mrb[0].mxu0 %v363
  %v565 = vpop.f32.mrb[0].mxu0
  %v566 = vadd.f32 0.0, %v565
  %v567 = vpop.f32.mrb[0].mxu0
  %v568 = vpop.f32.mrb[0].mxu0
  %v569 = vadd.f32 0.0, %v568
  %v570 = vpop.f32.mrb[0].mxu0
  %571 = vmatprep.mubr.bf16.mxu0 0
  %572 = vmatmul.mubr.bf16.gmra.mrb[0].mxu0 %v364
  %v573 = vpop.f32.mrb[0].mxu0
  %v574 = vadd.f32 0.0, %v573
  %v575 = vpop.f32.mrb[0].mxu0
  %v576 = vpop.f32.mrb[0].mxu0
  %v577 = vadd.f32 0.0, %v576
  %v578 = vpop.f32.mrb[0].mxu0
  %579 = vmatprep.mubr.bf16.mxu0 0
  %580 = vmatmul.mubr.bf16.gmra.mrb[0].mxu0 %v365
  %v581 = vpop.f32.mrb[0].mxu0
  %v582 = vadd.f32 0.0, %v581
  %v583 = vpop.f32.mrb[0].mxu0
  %v584 = vpop.f32.mrb[0].mxu0
  %v585 = vadd.f32 0.0, %v584
  %v586 = vpop.f32.mrb[0].mxu0
  %587 = vmatprep.mubr.bf16.mxu0 0
  %588 = vmatmul.mubr.bf16.gmra.mrb[0].mxu0 %v366
  %v589 = vpop.f32.mrb[0].mxu0
  %v590 = vadd.f32 0.0, %v589
  %v591 = vpop.f32.mrb[0].mxu0
  %v592 = vpop.f32.mrb[0].mxu0
  %v593 = vadd.f32 0.0, %v592
  %v594 = vpop.f32.mrb[0].mxu0
  %595 = vmatprep.mubr.bf16.mxu0 0
  %596 = vmatmul.mubr.bf16.gmra.mrb[0].mxu0 %v367
  %v597 = vpop.f32.mrb[0].mxu0
  %v598 = vadd.f32 0.0, %v597
  %v599 = vpop.f32.mrb[0].mxu0
  %v600 = vpop.f32.mrb[0].mxu0
  %v601 = vadd.f32 0.0, %v600
  %v602 = vpop.f32.mrb[0].mxu0
  %603 = vmatprep.mubr.bf16.mxu0 0
  %604 = vmatmul.mubr.bf16.gmra.mrb[0].mxu0 %v368
  %v605 = vpop.f32.mrb[0].mxu0
  %v606 = vadd.f32 0.0, %v605
  %v607 = vpop.f32.mrb[0].mxu0
  %v608 = vpop.f32.mrb[0].mxu0
  %v609 = vadd.f32 0.0, %v608
  %v610 = vpop.f32.mrb[0].mxu0
  %611 = vmatprep.mubr.bf16.mxu0 0
  %612 = vmatmul.mubr.bf16.gmra.mrb[0].mxu0 %v369
  %v613 = vpop.f32.mrb[0].mxu0
  %v614 = vadd.f32 0.0, %v613
  %v615 = vpop.f32.mrb[0].mxu0
  %v616 = vpop.f32.mrb[0].mxu0
  %v617 = vadd.f32 0.0, %v616
  %v618 = vpop.f32.mrb[0].mxu0
  %619 = vmatprep.mubr.bf16.mxu0 0
  %620 = vmatmul.mubr.bf16.gmra.mrb[0].mxu0 %v370
  %v621 = vpop.f32.mrb[0].mxu0
  %v622 = vadd.f32 0.0, %v621
  %v623 = vpop.f32.mrb[0].mxu0
  %v624 = vpop.f32.mrb[0].mxu0
  %v625 = vadd.f32 0.0, %v624
  %v626 = vpop.f32.mrb[0].mxu0
  %627 = vmatprep.mubr.bf16.mxu0 0
  %628 = vmatmul.mubr.bf16.gmra.mrb[0].mxu0 %v371
  %v629 = vpop.f32.mrb[0].mxu0
  %v630 = vadd.f32 0.0, %v629
  %v631 = vpop.f32.mrb[0].mxu0
  %v632 = vpop.f32.mrb[0].mxu0
  %v633 = vadd.f32 0.0, %v632
  %v634 = vpop.f32.mrb[0].mxu0
  %635 = vmatprep.mubr.bf16.mxu0 0
  %636 = vmatmul.mubr.bf16.gmra.mrb[0].mxu0 %v372
  %v637 = vpop.f32.mrb[0].mxu0
  %v638 = vadd.f32 0.0, %v637
  %v639 = vpop.f32.mrb[0].mxu0
  %v640 = vpop.f32.mrb[0].mxu0
  %v641 = vadd.f32 0.0, %v640
  %v642 = vpop.f32.mrb[0].mxu0
  %643 = vmatprep.mubr.bf16.mxu0 0
  %644 = vmatmul.mubr.bf16.gmra.mrb[0].mxu0 %v373
  %v645 = vpop.f32.mrb[0].mxu0
  %v646 = vadd.f32 0.0, %v645
  %v647 = vpop.f32.mrb[0].mxu0
  %v648 = vpop.f32.mrb[0].mxu0
  %v649 = vadd.f32 0.0, %v648
  %v650 = vpop.f32.mrb[0].mxu0
  %651 = vmatprep.mubr.bf16.mxu0 0
  %652 = vmatmul.mubr.bf16.gmra.mrb[0].mxu0 %v374
  %v653 = vpop.f32.mrb[0].mxu0
  %v654 = vadd.f32 0.0, %v653
  %v655 = vpop.f32.mrb[0].mxu0
  %v656 = vpop.f32.mrb[0].mxu0
  %v657 = vadd.f32 0.0, %v656
  %v658 = vpop.f32.mrb[0].mxu0
  %659 = vmatprep.mubr.bf16.mxu0 0
  %660 = vmatmul.mubr.bf16.gmra.mrb[0].mxu0 %v375
  %v661 = vpop.f32.mrb[0].mxu0
  %v662 = vadd.f32 0.0, %v661
  %v663 = vpop.f32.mrb[0].mxu0
  %v664 = vpop.f32.mrb[0].mxu0
  %v665 = vadd.f32 0.0, %v664
  %v666 = vpop.f32.mrb[0].mxu0
  %667 = vmatprep.mubr.bf16.mxu0 0
  %668 = vmatmul.mubr.bf16.gmra.mrb[0].mxu0 %v376
  %v669 = vpop.f32.mrb[0].mxu0
  %v670 = vadd.f32 0.0, %v669
  %v671 = vpop.f32.mrb[0].mxu0
  %v672 = vpop.f32.mrb[0].mxu0
  %v673 = vadd.f32 0.0, %v672
  %v674 = vpop.f32.mrb[0].mxu0
  %675 = vmatprep.mubr.bf16.mxu0 0
  %676 = vmatmul.mubr.bf16.gmra.mrb[0].mxu0 %v377
  %v677 = vpop.f32.mrb[0].mxu0
  %v678 = vadd.f32 0.0, %v677
  %v679 = vpop.f32.mrb[0].mxu0
  %v680 = vpop.f32.mrb[0].mxu0
  %v681 = vadd.f32 0.0, %v680
  %v682 = vpop.f32.mrb[0].mxu0
  %683 = vmatprep.mubr.bf16.mxu0 0
  %684 = vmatmul.mubr.bf16.gmra.mrb[0].mxu0 %v378
  %v685 = vpop.f32.mrb[0].mxu0
  %v686 = vadd.f32 0.0, %v685
  %v687 = vpop.f32.mrb[0].mxu0
  %v688 = vpop.f32.mrb[0].mxu0
  %v689 = vadd.f32 0.0, %v688
  %v690 = vpop.f32.mrb[0].mxu0
  %691 = vmatprep.mubr.bf16.mxu0 0
  %692 = vmatmul.mubr.bf16.gmra.mrb[0].mxu0 %v379
  %v693 = vpop.f32.mrb[0].mxu0
  %v694 = vadd.f32 0.0, %v693
  %v695 = vpop.f32.mrb[0].mxu0
  %v696 = vpop.f32.mrb[0].mxu0
  %v697 = vadd.f32 0.0, %v696
  %v698 = vpop.f32.mrb[0].mxu0
  %699 = vmatprep.mubr.bf16.mxu0 0
  %700 = vmatmul.mubr.bf16.gmra.mrb[0].mxu0 %v380
  %v701 = vpop.f32.mrb[0].mxu0
  %v702 = vadd.f32 0.0, %v701
  %v703 = vpop.f32.mrb[0].mxu0
  %v704 = vpop.f32.mrb[0].mxu0
  %v705 = vadd.f32 0.0, %v704
  %v706 = vpop.f32.mrb[0].mxu0
  %707 = vmatprep.mubr.bf16.mxu0 0
  %708 = vmatmul.mubr.bf16.gmra.mrb[0].mxu0 %v381
  %v709 = vpop.f32.mrb[0].mxu0
  %v710 = vadd.f32 0.0, %v709
  %v711 = vpop.f32.mrb[0].mxu0
  %v712 = vpop.f32.mrb[0].mxu0
  %v713 = vadd.f32 0.0, %v712
  %v714 = vpop.f32.mrb[0].mxu0
  %715 = vmatprep.mubr.bf16.mxu0 0
  %716 = vmatmul.mubr.bf16.gmra.mrb[0].mxu0 %v382
  %v717 = vpop.f32.mrb[0].mxu0
  %v718 = vadd.f32 0.0, %v717
  %v719 = vpop.f32.mrb[0].mxu0
  %v720 = vpop.f32.mrb[0].mxu0
  %v721 = vadd.f32 0.0, %v720
  %v722 = vpop.f32.mrb[0].mxu0
  %723 = vmatprep.mubr.bf16.mxu0 0
  %724 = vmatmul.mubr.bf16.gmra.mrb[0].mxu0 %v383
  %v725 = vpop.f32.mrb[0].mxu0
  %v726 = vadd.f32 0.0, %v725
  %v727 = vpop.f32.mrb[0].mxu0
  %v728 = vpop.f32.mrb[0].mxu0
  %v729 = vadd.f32 0.0, %v728
  %v730 = vpop.f32.mrb[0].mxu0
  %731 = vmatprep.mubr.bf16.mxu0 0
  %732 = vmatmul.mubr.bf16.gmra.mrb[0].mxu0 %v384
  %v733 = vpop.f32.mrb[0].mxu0
  %v734 = vadd.f32 0.0, %v733
  %v735 = vpop.f32.mrb[0].mxu0
  %v736 = vpop.f32.mrb[0].mxu0
  %v737 = vadd.f32 0.0, %v736
  %v738 = vpop.f32.mrb[0].mxu0
  %739 = vmatprep.mubr.bf16.mxu0 0
  %740 = vmatmul.mubr.bf16.gmra.mrb[0].mxu0 %v385
  %v741 = vpop.f32.mrb[0].mxu0
  %v742 = vadd.f32 0.0, %v741
  %v743 = vpop.f32.mrb[0].mxu0
  %v744 = vpop.f32.mrb[0].mxu0
  %v745 = vadd.f32 0.0, %v744
  %v746 = vpop.f32.mrb[0].mxu0
  %747 = vmatprep.mubr.bf16.mxu0 0
  %748 = vmatmul.mubr.bf16.gmra.mrb[0].mxu0 %v386
  %v749 = vpop.f32.mrb[0].mxu0
  %v750 = vadd.f32 0.0, %v749
  %v751 = vpop.f32.mrb[0].mxu0
  %v752 = vpop.f32.mrb[0].mxu0
  %v753 = vadd.f32 0.0, %v752
  %v754 = vpop.f32.mrb[0].mxu0
  %755 = vdwg.mxu0
  %v756 = vadd.f32 %v83, %v502
  %v757 = vadd.f32 %v84, %v505
  %v758 = vadd.f32 %v85, %v510
  %v759 = vadd.f32 %v86, %v513
  %v760 = vadd.f32 %v87, %v518
  %v761 = vadd.f32 %v88, %v521
  %v762 = vadd.f32 %v89, %v526
  %v763 = vadd.f32 %v90, %v529
  %v764 = vadd.f32 %v91, %v534
  %v765 = vadd.f32 %v92, %v537
  %v766 = vadd.f32 %v93, %v542
  %v767 = vadd.f32 %v94, %v545
  %v768 = vadd.f32 %v95, %v550
  %v769 = vadd.f32 %v96, %v553
  %v770 = vadd.f32 %v97, %v558
  %v771 = vadd.f32 %v98, %v561
  %v772 = vadd.f32 %v99, %v566
  %v773 = vadd.f32 %v100, %v569
  %v774 = vadd.f32 %v101, %v574
  %v775 = vadd.f32 %v102, %v577
  %v776 = vadd.f32 %v103, %v582
  %v777 = vadd.f32 %v104, %v585
  %v778 = vadd.f32 %v105, %v590
  %v779 = vadd.f32 %v106, %v593
  %v780 = vadd.f32 %v107, %v598
  %v781 = vadd.f32 %v108, %v601
  %v782 = vadd.f32 %v109, %v606
  %v783 = vadd.f32 %v110, %v609
  %v784 = vadd.f32 %v111, %v614
  %v785 = vadd.f32 %v112, %v617
  %v786 = vadd.f32 %v113, %v622
  %v787 = vadd.f32 %v114, %v625
  %v788 = vadd.f32 %v115, %v630
  %v789 = vadd.f32 %v116, %v633
  %v790 = vadd.f32 %v117, %v638
  %v791 = vadd.f32 %v118, %v641
  %v792 = vadd.f32 %v119, %v646
  %v793 = vadd.f32 %v120, %v649
  %v794 = vadd.f32 %v121, %v654
  %v795 = vadd.f32 %v122, %v657
  %v796 = vadd.f32 %v123, %v662
  %v797 = vadd.f32 %v124, %v665
  %v798 = vadd.f32 %v125, %v670
  %v799 = vadd.f32 %v126, %v673
  %v800 = vadd.f32 %v127, %v678
  %v801 = vadd.f32 %v128, %v681
  %v802 = vadd.f32 %v129, %v686
  %v803 = vadd.f32 %v130, %v689
  %v804 = vadd.f32 %v131, %v694
  %v805 = vadd.f32 %v132, %v697
  %v806 = vadd.f32 %v133, %v702
  %v807 = vadd.f32 %v134, %v705
  %v808 = vadd.f32 %v135, %v710
  %v809 = vadd.f32 %v136, %v713
  %v810 = vadd.f32 %v137, %v718
  %v811 = vadd.f32 %v138, %v721
  %v812 = vadd.f32 %v139, %v726
  %v813 = vadd.f32 %v140, %v729
  %v814 = vadd.f32 %v141, %v734
  %v815 = vadd.f32 %v142, %v737
  %v816 = vadd.f32 %v143, %v742
  %v817 = vadd.f32 %v144, %v745
  %v818 = vadd.f32 %v145, %v750
  %v819 = vadd.f32 %v146, %v753
  %820 = vst [vmem:[%s2] sm:$0xff] %v756
  %821 = vst [vmem:[%s2 + $0x8] sm:$0xff] %v757
  %822 = vst [vmem:[%s2 + $0x10] sm:$0xff] %v758
  %823 = vst [vmem:[%s2 + $0x18] sm:$0xff] %v759
  %824 = vst [vmem:[%s2 + $0x20] sm:$0xff] %v760
  %825 = vst [vmem:[%s2 + $0x28] sm:$0xff] %v761
  %826 = vst [vmem:[%s2 + $0x30] sm:$0xff] %v762
  %827 = vst [vmem:[%s2 + $0x38] sm:$0xff] %v763
  %828 = vst [vmem:[%s2 + $0x40] sm:$0xff] %v764
  %829 = vst [vmem:[%s2 + $0x48] sm:$0xff] %v765
  %830 = vst [vmem:[%s2 + $0x50] sm:$0xff] %v766
  %831 = vst [vmem:[%s2 + $0x58] sm:$0xff] %v767
  %832 = vst [vmem:[%s2 + $0x60] sm:$0xff] %v768
  %833 = vst [vmem:[%s2 + $0x68] sm:$0xff] %v769
  %834 = vst [vmem:[%s2 + $0x70] sm:$0xff] %v770
  %835 = vst [vmem:[%s2 + $0x78] sm:$0xff] %v771
  %836 = vst [vmem:[%s2 + $0x80] sm:$0xff] %v772
  %837 = vst [vmem:[%s2 + $0x88] sm:$0xff] %v773
  %838 = vst [vmem:[%s2 + $0x90] sm:$0xff] %v774
  %839 = vst [vmem:[%s2 + $0x98] sm:$0xff] %v775
  %840 = vst [vmem:[%s2 + $0xa0] sm:$0xff] %v776
  %841 = vst [vmem:[%s2 + $0xa8] sm:$0xff] %v777
  %842 = vst [vmem:[%s2 + $0xb0] sm:$0xff] %v778
  %843 = vst [vmem:[%s2 + $0xb8] sm:$0xff] %v779
  %844 = vst [vmem:[%s2 + $0xc0] sm:$0xff] %v780
  %845 = vst [vmem:[%s2 + $0xc8] sm:$0xff] %v781
  %846 = vst [vmem:[%s2 + $0xd0] sm:$0xff] %v782
  %847 = vst [vmem:[%s2 + $0xd8] sm:$0xff] %v783
  %848 = vst [vmem:[%s2 + $0xe0] sm:$0xff] %v784
  %849 = vst [vmem:[%s2 + $0xe8] sm:$0xff] %v785
  %850 = vst [vmem:[%s2 + $0xf0] sm:$0xff] %v786
  %851 = vst [vmem:[%s2 + $0xf8] sm:$0xff] %v787
  %852 = vst [vmem:[%s2 + $0x100] sm:$0xff] %v788
  %853 = vst [vmem:[%s2 + $0x108] sm:$0xff] %v789
  %854 = vst [vmem:[%s2 + $0x110] sm:$0xff] %v790
  %855 = vst [vmem:[%s2 + $0x118] sm:$0xff] %v791
  %856 = vst [vmem:[%s2 + $0x120] sm:$0xff] %v792
  %857 = vst [vmem:[%s2 + $0x128] sm:$0xff] %v793
  %858 = vst [vmem:[%s2 + $0x130] sm:$0xff] %v794
  %859 = vst [vmem:[%s2 + $0x138] sm:$0xff] %v795
  %860 = vst [vmem:[%s2 + $0x140] sm:$0xff] %v796
  %861 = vst [vmem:[%s2 + $0x148] sm:$0xff] %v797
  %862 = vst [vmem:[%s2 + $0x150] sm:$0xff] %v798
  %863 = vst [vmem:[%s2 + $0x158] sm:$0xff] %v799
  %864 = vst [vmem:[%s2 + $0x160] sm:$0xff] %v800
  %865 = vst [vmem:[%s2 + $0x168] sm:$0xff] %v801
  %866 = vst [vmem:[%s2 + $0x170] sm:$0xff] %v802
  %867 = vst [vmem:[%s2 + $0x178] sm:$0xff] %v803
  %868 = vst [vmem:[%s2 + $0x180] sm:$0xff] %v804
  %869 = vst [vmem:[%s2 + $0x188] sm:$0xff] %v805
  %870 = vst [vmem:[%s2 + $0x190] sm:$0xff] %v806
  %871 = vst [vmem:[%s2 + $0x198] sm:$0xff] %v807
  %872 = vst [vmem:[%s2 + $0x1a0] sm:$0xff] %v808
  %873 = vst [vmem:[%s2 + $0x1a8] sm:$0xff] %v809
  %874 = vst [vmem:[%s2 + $0x1b0] sm:$0xff] %v810
  %875 = vst [vmem:[%s2 + $0x1b8] sm:$0xff] %v811
  %876 = vst [vmem:[%s2 + $0x1c0] sm:$0xff] %v812
  %877 = vst [vmem:[%s2 + $0x1c8] sm:$0xff] %v813
  %878 = vst [vmem:[%s2 + $0x1d0] sm:$0xff] %v814
  %879 = vst [vmem:[%s2 + $0x1d8] sm:$0xff] %v815
  %880 = vst [vmem:[%s2 + $0x1e0] sm:$0xff] %v816
  %881 = vst [vmem:[%s2 + $0x1e8] sm:$0xff] %v817
  %882 = vst [vmem:[%s2 + $0x1f0] sm:$0xff] %v818
  %883 = vst [vmem:[%s2 + $0x1f8] sm:$0xff] %v819
  // Predicated region
  $region14: #{residual_forward.4} parent=0 // pred_check
    %p884 = pneg %p15
  $region15: #{residual_forward.4} parent=0 // pred_check_branch
    %886 = sbr.rel (%p884) target = $region17
  $region16: #{residual_forward.4} parent=0 // pred_region
    %v887 = vld [vmem:[%s2] sm:$0xff]
    %v888 = vld [vmem:[%s2 + $0x8] sm:$0xff]
    %v889 = vld [vmem:[%s2 + $0x10] sm:$0xff]
    %v890 = vld [vmem:[%s2 + $0x18] sm:$0xff]
    %v891 = vld [vmem:[%s2 + $0x20] sm:$0xff]
    %v892 = vld [vmem:[%s2 + $0x28] sm:$0xff]
    %v893 = vld [vmem:[%s2 + $0x30] sm:$0xff]
    %v894 = vld [vmem:[%s2 + $0x38] sm:$0xff]
    %v895 = vld [vmem:[%s2 + $0x40] sm:$0xff]
    %v896 = vld [vmem:[%s2 + $0x48] sm:$0xff]
    %v897 = vld [vmem:[%s2 + $0x50] sm:$0xff]
    %v898 = vld [vmem:[%s2 + $0x58] sm:$0xff]
    %v899 = vld [vmem:[%s2 + $0x60] sm:$0xff]
    %v900 = vld [vmem:[%s2 + $0x68] sm:$0xff]
    %v901 = vld [vmem:[%s2 + $0x70] sm:$0xff]
    %v902 = vld [vmem:[%s2 + $0x78] sm:$0xff]
    %v903 = vld [vmem:[%s2 + $0x80] sm:$0xff]
    %v904 = vld [vmem:[%s2 + $0x88] sm:$0xff]
    %v905 = vld [vmem:[%s2 + $0x90] sm:$0xff]
    %v906 = vld [vmem:[%s2 + $0x98] sm:$0xff]
    %v907 = vld [vmem:[%s2 + $0xa0] sm:$0xff]
    %v908 = vld [vmem:[%s2 + $0xa8] sm:$0xff]
    %v909 = vld [vmem:[%s2 + $0xb0] sm:$0xff]
    %v910 = vld [vmem:[%s2 + $0xb8] sm:$0xff]
    %v911 = vld [vmem:[%s2 + $0xc0] sm:$0xff]
    %v912 = vld [vmem:[%s2 + $0xc8] sm:$0xff]
    %v913 = vld [vmem:[%s2 + $0xd0] sm:$0xff]
    %v914 = vld [vmem:[%s2 + $0xd8] sm:$0xff]
    %v915 = vld [vmem:[%s2 + $0xe0] sm:$0xff]
    %v916 = vld [vmem:[%s2 + $0xe8] sm:$0xff]
    %v917 = vld [vmem:[%s2 + $0xf0] sm:$0xff]
    %v918 = vld [vmem:[%s2 + $0xf8] sm:$0xff]
    %v919 = vld [vmem:[%s2 + $0x100] sm:$0xff]
    %v920 = vld [vmem:[%s2 + $0x108] sm:$0xff]
    %v921 = vld [vmem:[%s2 + $0x110] sm:$0xff]
    %v922 = vld [vmem:[%s2 + $0x118] sm:$0xff]
    %v923 = vld [vmem:[%s2 + $0x120] sm:$0xff]
    %v924 = vld [vmem:[%s2 + $0x128] sm:$0xff]
    %v925 = vld [vmem:[%s2 + $0x130] sm:$0xff]
    %v926 = vld [vmem:[%s2 + $0x138] sm:$0xff]
    %v927 = vld [vmem:[%s2 + $0x140] sm:$0xff]
    %v928 = vld [vmem:[%s2 + $0x148] sm:$0xff]
    %v929 = vld [vmem:[%s2 + $0x150] sm:$0xff]
    %v930 = vld [vmem:[%s2 + $0x158] sm:$0xff]
    %v931 = vld [vmem:[%s2 + $0x160] sm:$0xff]
    %v932 = vld [vmem:[%s2 + $0x168] sm:$0xff]
    %v933 = vld [vmem:[%s2 + $0x170] sm:$0xff]
    %v934 = vld [vmem:[%s2 + $0x178] sm:$0xff]
    %v935 = vld [vmem:[%s2 + $0x180] sm:$0xff]
    %v936 = vld [vmem:[%s2 + $0x188] sm:$0xff]
    %v937 = vld [vmem:[%s2 + $0x190] sm:$0xff]
    %v938 = vld [vmem:[%s2 + $0x198] sm:$0xff]
    %v939 = vld [vmem:[%s2 + $0x1a0] sm:$0xff]
    %v940 = vld [vmem:[%s2 + $0x1a8] sm:$0xff]
    %v941 = vld [vmem:[%s2 + $0x1b0] sm:$0xff]
    %v942 = vld [vmem:[%s2 + $0x1b8] sm:$0xff]
    %v943 = vld [vmem:[%s2 + $0x1c0] sm:$0xff]
    %v944 = vld [vmem:[%s2 + $0x1c8] sm:$0xff]
    %v945 = vld [vmem:[%s2 + $0x1d0] sm:$0xff]
    %v946 = vld [vmem:[%s2 + $0x1d8] sm:$0xff]
    %v947 = vld [vmem:[%s2 + $0x1e0] sm:$0xff]
    %v948 = vld [vmem:[%s2 + $0x1e8] sm:$0xff]
    %v949 = vld [vmem:[%s2 + $0x1f0] sm:$0xff]
    %v950 = vld [vmem:[%s2 + $0x1f8] sm:$0xff]
    %951 = vst [vmem:[%s3] sm:$0xff] 0.0
    %952 = vst [vmem:[%s4] sm:$0xff] 0.0
    %v953 = vadd.f32 %v887, %v888
    %v954 = vadd.f32 %v953, %v889
    %v955 = vadd.f32 %v954, %v890
    %v956 = vadd.f32 %v955, %v891
    %v957 = vadd.f32 %v956, %v892
    %v958 = vadd.f32 %v957, %v893
    %v959 = vadd.f32 %v958, %v894
    %v960 = vadd.f32 %v959, %v895
    %v961 = vadd.f32 %v960, %v896
    %v962 = vadd.f32 %v961, %v897
    %v963 = vadd.f32 %v962, %v898
    %v964 = vadd.f32 %v963, %v899
    %v965 = vadd.f32 %v964, %v900
    %v966 = vadd.f32 %v965, %v901
    %v967 = vadd.f32 %v966, %v902
    %v968 = vadd.f32 %v967, %v903
    %v969 = vadd.f32 %v968, %v904
    %v970 = vadd.f32 %v969, %v905
    %v971 = vadd.f32 %v970, %v906
    %v972 = vadd.f32 %v971, %v907
    %v973 = vadd.f32 %v972, %v908
    %v974 = vadd.f32 %v973, %v909
    %v975 = vadd.f32 %v974, %v910
    %v976 = vadd.f32 %v975, %v911
    %v977 = vadd.f32 %v976, %v912
    %v978 = vadd.f32 %v977, %v913
    %v979 = vadd.f32 %v978, %v914
    %v980 = vadd.f32 %v979, %v915
    %v981 = vadd.f32 %v980, %v916
    %v982 = vadd.f32 %v981, %v917
    %v983 = vadd.f32 %v982, %v918
    %v984 = vadd.f32 %v983, %v919
    %v985 = vadd.f32 %v984, %v920
    %v986 = vadd.f32 %v985, %v921
    %v987 = vadd.f32 %v986, %v922
    %v988 = vadd.f32 %v987, %v923
    %v989 = vadd.f32 %v988, %v924
    %v990 = vadd.f32 %v989, %v925
    %v991 = vadd.f32 %v990, %v926
    %v992 = vadd.f32 %v991, %v927
    %v993 = vadd.f32 %v992, %v928
    %v994 = vadd.f32 %v993, %v929
    %v995 = vadd.f32 %v994, %v930
    %v996 = vadd.f32 %v995, %v931
    %v997 = vadd.f32 %v996, %v932
    %v998 = vadd.f32 %v997, %v933
    %v999 = vadd.f32 %v998, %v934
    %v1000 = vadd.f32 %v999, %v935
    %v1001 = vadd.f32 %v1000, %v936
    %v1002 = vadd.f32 %v1001, %v937
    %v1003 = vadd.f32 %v1002, %v938
    %v1004 = vadd.f32 %v1003, %v939
    %v1005 = vadd.f32 %v1004, %v940
    %v1006 = vadd.f32 %v1005, %v941
    %v1007 = vadd.f32 %v1006, %v942
    %v1008 = vadd.f32 %v1007, %v943
    %v1009 = vadd.f32 %v1008, %v944
    %v1010 = vadd.f32 %v1009, %v945
    %v1011 = vadd.f32 %v1010, %v946
    %v1012 = vadd.f32 %v1011, %v947
    %v1013 = vadd.f32 %v1012, %v948
    %v1014 = vadd.f32 %v1013, %v949
    %v1015 = vadd.f32 %v1014, %v950
    %v1016 = vrot.slane %v1015, 4
    %v1017 = vadd.f32 %v1015, %v1016
    %v1018 = vrot.slane %v1017, 2
    %v1019 = vadd.f32 %v1017, %v1018
    %v1020 = vrot.slane %v1019, 1
    %v1021 = vadd.f32 %v1019, %v1020
    %1022 = vst [vmem:[%s3] sm:$0x1] %v1021
    %v1023 = vmul.f32 %v887, %v887
    %v1024 = vmul.f32 %v888, %v888
    %v1025 = vmul.f32 %v889, %v889
    %v1026 = vmul.f32 %v890, %v890
    %v1027 = vmul.f32 %v891, %v891
    %v1028 = vmul.f32 %v892, %v892
    %v1029 = vmul.f32 %v893, %v893
    %v1030 = vmul.f32 %v894, %v894
    %v1031 = vmul.f32 %v895, %v895
    %v1032 = vmul.f32 %v896, %v896
    %v1033 = vmul.f32 %v897, %v897
    %v1034 = vmul.f32 %v898, %v898
    %v1035 = vmul.f32 %v899, %v899
    %v1036 = vmul.f32 %v900, %v900
    %v1037 = vmul.f32 %v901, %v901
    %v1038 = vmul.f32 %v902, %v902
    %v1039 = vmul.f32 %v903, %v903
    %v1040 = vmul.f32 %v904, %v904
    %v1041 = vmul.f32 %v905, %v905
    %v1042 = vmul.f32 %v906, %v906
    %v1043 = vmul.f32 %v907, %v907
    %v1044 = vmul.f32 %v908, %v908
    %v1045 = vmul.f32 %v909, %v909
    %v1046 = vmul.f32 %v910, %v910
    %v1047 = vmul.f32 %v911, %v911
    %v1048 = vmul.f32 %v912, %v912
    %v1049 = vmul.f32 %v913, %v913
    %v1050 = vmul.f32 %v914, %v914
    %v1051 = vmul.f32 %v915, %v915
    %v1052 = vmul.f32 %v916, %v916
    %v1053 = vmul.f32 %v917, %v917
    %v1054 = vmul.f32 %v918, %v918
    %v1055 = vmul.f32 %v919, %v919
    %v1056 = vmul.f32 %v920, %v920
    %v1057 = vmul.f32 %v921, %v921
    %v1058 = vmul.f32 %v922, %v922
    %v1059 = vmul.f32 %v923, %v923
    %v1060 = vmul.f32 %v924, %v924
    %v1061 = vmul.f32 %v925, %v925
    %v1062 = vmul.f32 %v926, %v926
    %v1063 = vmul.f32 %v927, %v927
    %v1064 = vmul.f32 %v928, %v928
    %v1065 = vmul.f32 %v929, %v929
    %v1066 = vmul.f32 %v930, %v930
    %v1067 = vmul.f32 %v931, %v931
    %v1068 = vmul.f32 %v932, %v932
    %v1069 = vmul.f32 %v933, %v933
    %v1070 = vmul.f32 %v934, %v934
    %v1071 = vmul.f32 %v935, %v935
    %v1072 = vmul.f32 %v936, %v936
    %v1073 = vmul.f32 %v937, %v937
    %v1074 = vmul.f32 %v938, %v938
    %v1075 = vmul.f32 %v939, %v939
    %v1076 = vmul.f32 %v940, %v940
    %v1077 = vmul.f32 %v941, %v941
    %v1078 = vmul.f32 %v942, %v942
    %v1079 = vmul.f32 %v943, %v943
    %v1080 = vmul.f32 %v944, %v944
    %v1081 = vmul.f32 %v945, %v945
    %v1082 = vmul.f32 %v946, %v946
    %v1083 = vmul.f32 %v947, %v947
    %v1084 = vmul.f32 %v948, %v948
    %v1085 = vmul.f32 %v949, %v949
    %v1086 = vmul.f32 %v950, %v950
    %v1087 = vadd.f32 %v1023, %v1024
    %v1088 = vadd.f32 %v1087, %v1025
    %v1089 = vadd.f32 %v1088, %v1026
    %v1090 = vadd.f32 %v1089, %v1027
    %v1091 = vadd.f32 %v1090, %v1028
    %v1092 = vadd.f32 %v1091, %v1029
    %v1093 = vadd.f32 %v1092, %v1030
    %v1094 = vadd.f32 %v1093, %v1031
    %v1095 = vadd.f32 %v1094, %v1032
    %v1096 = vadd.f32 %v1095, %v1033
    %v1097 = vadd.f32 %v1096, %v1034
    %v1098 = vadd.f32 %v1097, %v1035
    %v1099 = vadd.f32 %v1098, %v1036
    %v1100 = vadd.f32 %v1099, %v1037
    %v1101 = vadd.f32 %v1100, %v1038
    %v1102 = vadd.f32 %v1101, %v1039
    %v1103 = vadd.f32 %v1102, %v1040
    %v1104 = vadd.f32 %v1103, %v1041
    %v1105 = vadd.f32 %v1104, %v1042
    %v1106 = vadd.f32 %v1105, %v1043
    %v1107 = vadd.f32 %v1106, %v1044
    %v1108 = vadd.f32 %v1107, %v1045
    %v1109 = vadd.f32 %v1108, %v1046
    %v1110 = vadd.f32 %v1109, %v1047
    %v1111 = vadd.f32 %v1110, %v1048
    %v1112 = vadd.f32 %v1111, %v1049
    %v1113 = vadd.f32 %v1112, %v1050
    %v1114 = vadd.f32 %v1113, %v1051
    %v1115 = vadd.f32 %v1114, %v1052
    %v1116 = vadd.f32 %v1115, %v1053
    %v1117 = vadd.f32 %v1116, %v1054
    %v1118 = vadd.f32 %v1117, %v1055
    %v1119 = vadd.f32 %v1118, %v1056
    %v1120 = vadd.f32 %v1119, %v1057
    %v1121 = vadd.f32 %v1120, %v1058
    %v1122 = vadd.f32 %v1121, %v1059
    %v1123 = vadd.f32 %v1122, %v1060
    %v1124 = vadd.f32 %v1123, %v1061
    %v1125 = vadd.f32 %v1124, %v1062
    %v1126 = vadd.f32 %v1125, %v1063
    %v1127 = vadd.f32 %v1126, %v1064
    %v1128 = vadd.f32 %v1127, %v1065
    %v1129 = vadd.f32 %v1128, %v1066
    %v1130 = vadd.f32 %v1129, %v1067
    %v1131 = vadd.f32 %v1130, %v1068
    %v1132 = vadd.f32 %v1131, %v1069
    %v1133 = vadd.f32 %v1132, %v1070
    %v1134 = vadd.f32 %v1133, %v1071
    %v1135 = vadd.f32 %v1134, %v1072
    %v1136 = vadd.f32 %v1135, %v1073
    %v1137 = vadd.f32 %v1136, %v1074
    %v1138 = vadd.f32 %v1137, %v1075
    %v1139 = vadd.f32 %v1138, %v1076
    %v1140 = vadd.f32 %v1139, %v1077
    %v1141 = vadd.f32 %v1140, %v1078
    %v1142 = vadd.f32 %v1141, %v1079
    %v1143 = vadd.f32 %v1142, %v1080
    %v1144 = vadd.f32 %v1143, %v1081
    %v1145 = vadd.f32 %v1144, %v1082
    %v1146 = vadd.f32 %v1145, %v1083
    %v1147 = vadd.f32 %v1146, %v1084
    %v1148 = vadd.f32 %v1147, %v1085
    %v1149 = vadd.f32 %v1148, %v1086
    %v1150 = vrot.slane %v1149, 4
    %v1151 = vadd.f32 %v1149, %v1150
    %v1152 = vrot.slane %v1151, 2
    %v1153 = vadd.f32 %v1151, %v1152
    %v1154 = vrot.slane %v1153, 1
    %v1155 = vadd.f32 %v1153, %v1154
    %1156 = vst [vmem:[%s4] sm:$0x1] %v1155
  $region17: #{residual_forward.4} parent=0 // pred_fallthru
    _
  // Predicated region
  $region18: #{residual_forward.4} parent=0 // pred_check
    _
  $region19: #{residual_forward.4} parent=0 // pred_check_branch
    %1158 = sbr.rel (0) target = $region21
  $region20: #{residual_forward.4} parent=0 // pred_region
    _
  $region21: #{residual_forward.4} parent=0 // pred_fallthru
    _
  // Predicated region
  $region22: #{residual_forward.4} parent=0 // pred_check
    _
  $region23: #{residual_forward.4} parent=0 // pred_check_branch
    %1160 = sbr.rel (0) target = $region25
  $region24: #{residual_forward.4} parent=0 // pred_region
    _
  $region25: #{residual_forward.4} parent=0 // pred_fallthru
    _
  // Predicated region
  $region26: #{residual_forward.4} parent=0 // pred_check
    _
  $region27: #{residual_forward.4} parent=0 // pred_check_branch
    %1162 = sbr.rel (0) target = $region29
  $region28: #{residual_forward.4} parent=0 // pred_region
    _
  $region29: #{residual_forward.4} parent=0 // pred_fallthru
    _
  // Predicated region
  $region30: #{residual_forward.4} parent=0 // pred_check
    _
  $region31: #{residual_forward.4} parent=0 // pred_check_branch
    %1164 = sbr.rel (0) target = $region33
  $region32: #{residual_forward.4} parent=0 // pred_region
    _
  $region33: #{residual_forward.4} parent=0 // pred_fallthru
    _
  // Predicated region
  $region34: #{residual_forward.4} parent=0 // pred_check
    _
  $region35: #{residual_forward.4} parent=0 // pred_check_branch
    %1166 = sbr.rel (0) target = $region37
  $region36: #{residual_forward.4} parent=0 // pred_region
    _
  $region37: #{residual_forward.4} parent=0 // pred_fallthru
    _
  // Predicated region
  $region38: #{residual_forward.4} parent=0 // pred_check
    _
  $region39: #{residual_forward.4} parent=0 // pred_check_branch
    %1168 = sbr.rel (0) target = $region41
  $region40: #{residual_forward.4} parent=0 // pred_region
    _
  $region41: #{residual_forward.4} parent=0 // pred_fallthru
    _

// kernel: residual_forward.7
$region0: #{residual_forward.7}
  #allocation0 [shape = 'u32[]', space=smem, size = 0x4, offset = 0x4, fixed_abs, tag = 'smem constant byte address 0x4 - core index']
  #allocation1 [shape = 'u32[144,128]{1,0:T(1,128)}', space=vmem, size = 0x12000, scoped, tag = 'internal scratch']
  %s0 = inlined_call_operand.vmem [shape: f32[512,128], index: 0, kind: input, shape index: {}, may-alias: {0,4}]
  %s1 = inlined_call_operand.vmem [shape: f32[1,128], index: 1, kind: input, shape index: {}]
  %s2 = inlined_call_operand.vmem [shape: f32[1,128], index: 2, kind: input, shape index: {}]
  %s3 = inlined_call_operand.vmem [shape: f32[512,128], index: 3, kind: input, shape index: {}]
  %s4 = inlined_call_operand.vmem [shape: f32[512,128], index: 4, kind: output, shape index: {}, may-alias: {0,4}]
  %s5 = sld [smem:[#allocation0]]
  $region26: #{residual_forward.7} parent=0
    _
  %s7 = ssub.s32 1, %s5
  %s8 = scalar_select 0, %s7, %s5
  // Predicated region
  $region2: #{residual_forward.7} parent=0 // pred_check
    _
  $region3: #{residual_forward.7} parent=0 // pred_check_branch
    %10 = sbr.rel (0) target = $region5
  $region4: #{residual_forward.7} parent=0 // pred_region
    _
  $region5: #{residual_forward.7} parent=0 // pred_fallthru
    _
  // Predicated region
  $region6: #{residual_forward.7} parent=0 // pred_check
    _
  $region7: #{residual_forward.7} parent=0 // pred_check_branch
    %12 = sbr.rel (0) target = $region9
  $region8: #{residual_forward.7} parent=0 // pred_region
    _
  $region9: #{residual_forward.7} parent=0 // pred_fallthru
    _
  // Predicated region
  $region10: #{residual_forward.7} parent=0 // pred_check
    _
  $region11: #{residual_forward.7} parent=0 // pred_check_branch
    %14 = sbr.rel (0) target = $region13
  $region12: #{residual_forward.7} parent=0 // pred_region
    _
  $region13: #{residual_forward.7} parent=0 // pred_fallthru
    _
  // Predicated region
  $region14: #{residual_forward.7} parent=0 // pred_check
    _
  $region15: #{residual_forward.7} parent=0 // pred_check_branch
    %16 = sbr.rel (0) target = $region17
  $region16: #{residual_forward.7} parent=0 // pred_region
    _
  $region17: #{residual_forward.7} parent=0 // pred_fallthru
    _
  %v17 = vld [vmem:[%s0] sm:$0xff]
  %v18 = vld [vmem:[%s0 + $0x8] sm:$0xff]
  %v19 = vld [vmem:[%s0 + $0x10] sm:$0xff]
  %v20 = vld [vmem:[%s0 + $0x18] sm:$0xff]
  %v21 = vld [vmem:[%s0 + $0x20] sm:$0xff]
  %v22 = vld [vmem:[%s0 + $0x28] sm:$0xff]
  %v23 = vld [vmem:[%s0 + $0x30] sm:$0xff]
  %v24 = vld [vmem:[%s0 + $0x38] sm:$0xff]
  %v25 = vld [vmem:[%s0 + $0x40] sm:$0xff]
  %v26 = vld [vmem:[%s0 + $0x48] sm:$0xff]
  %v27 = vld [vmem:[%s0 + $0x50] sm:$0xff]
  %v28 = vld [vmem:[%s0 + $0x58] sm:$0xff]
  %v29 = vld [vmem:[%s0 + $0x60] sm:$0xff]
  %v30 = vld [vmem:[%s0 + $0x68] sm:$0xff]
  %v31 = vld [vmem:[%s0 + $0x70] sm:$0xff]
  %v32 = vld [vmem:[%s0 + $0x78] sm:$0xff]
  %v33 = vld [vmem:[%s0 + $0x80] sm:$0xff]
  %v34 = vld [vmem:[%s0 + $0x88] sm:$0xff]
  %v35 = vld [vmem:[%s0 + $0x90] sm:$0xff]
  %v36 = vld [vmem:[%s0 + $0x98] sm:$0xff]
  %v37 = vld [vmem:[%s0 + $0xa0] sm:$0xff]
  %v38 = vld [vmem:[%s0 + $0xa8] sm:$0xff]
  %v39 = vld [vmem:[%s0 + $0xb0] sm:$0xff]
  %v40 = vld [vmem:[%s0 + $0xb8] sm:$0xff]
  %v41 = vld [vmem:[%s0 + $0xc0] sm:$0xff]
  %v42 = vld [vmem:[%s0 + $0xc8] sm:$0xff]
  %v43 = vld [vmem:[%s0 + $0xd0] sm:$0xff]
  %v44 = vld [vmem:[%s0 + $0xd8] sm:$0xff]
  %v45 = vld [vmem:[%s0 + $0xe0] sm:$0xff]
  %v46 = vld [vmem:[%s0 + $0xe8] sm:$0xff]
  %v47 = vld [vmem:[%s0 + $0xf0] sm:$0xff]
  %v48 = vld [vmem:[%s0 + $0xf8] sm:$0xff]
  %v49 = vld [vmem:[%s0 + $0x100] sm:$0xff]
  %v50 = vld [vmem:[%s0 + $0x108] sm:$0xff]
  %v51 = vld [vmem:[%s0 + $0x110] sm:$0xff]
  %v52 = vld [vmem:[%s0 + $0x118] sm:$0xff]
  %v53 = vld [vmem:[%s0 + $0x120] sm:$0xff]
  %v54 = vld [vmem:[%s0 + $0x128] sm:$0xff]
  %v55 = vld [vmem:[%s0 + $0x130] sm:$0xff]
  %v56 = vld [vmem:[%s0 + $0x138] sm:$0xff]
  %v57 = vld [vmem:[%s0 + $0x140] sm:$0xff]
  %v58 = vld [vmem:[%s0 + $0x148] sm:$0xff]
  %v59 = vld [vmem:[%s0 + $0x150] sm:$0xff]
  %v60 = vld [vmem:[%s0 + $0x158] sm:$0xff]
  %v61 = vld [vmem:[%s0 + $0x160] sm:$0xff]
  %v62 = vld [vmem:[%s0 + $0x168] sm:$0xff]
  %v63 = vld [vmem:[%s0 + $0x170] sm:$0xff]
  %v64 = vld [vmem:[%s0 + $0x178] sm:$0xff]
  %v65 = vld [vmem:[%s0 + $0x180] sm:$0xff]
  %v66 = vld [vmem:[%s0 + $0x188] sm:$0xff]
  %v67 = vld [vmem:[%s0 + $0x190] sm:$0xff]
  %v68 = vld [vmem:[%s0 + $0x198] sm:$0xff]
  %v69 = vld [vmem:[%s0 + $0x1a0] sm:$0xff]
  %v70 = vld [vmem:[%s0 + $0x1a8] sm:$0xff]
  %v71 = vld [vmem:[%s0 + $0x1b0] sm:$0xff]
  %v72 = vld [vmem:[%s0 + $0x1b8] sm:$0xff]
  %v73 = vld [vmem:[%s0 + $0x1c0] sm:$0xff]
  %v74 = vld [vmem:[%s0 + $0x1c8] sm:$0xff]
  %v75 = vld [vmem:[%s0 + $0x1d0] sm:$0xff]
  %v76 = vld [vmem:[%s0 + $0x1d8] sm:$0xff]
  %v77 = vld [vmem:[%s0 + $0x1e0] sm:$0xff]
  %v78 = vld [vmem:[%s0 + $0x1e8] sm:$0xff]
  %v79 = vld [vmem:[%s0 + $0x1f0] sm:$0xff]
  %v80 = vld [vmem:[%s0 + $0x1f8] sm:$0xff]
  %v81 = vld [vmem:[%s1] sm:$0x1]
  %v83 = vlaneseq
  %v84 = vshrl.u32 %v83, 7
  %v85 = vsub.s32 0, %v84
  %v86 = vrot.slane %v81, %v85
  %v88 = vmul.f32 %v17, %v86
  %v89 = vmul.f32 %v18, %v86
  %v90 = vmul.f32 %v19, %v86
  %v91 = vmul.f32 %v20, %v86
  %v92 = vmul.f32 %v21, %v86
  %v93 = vmul.f32 %v22, %v86
  %v94 = vmul.f32 %v23, %v86
  %v95 = vmul.f32 %v24, %v86
  %v96 = vmul.f32 %v25, %v86
  %v97 = vmul.f32 %v26, %v86
  %v98 = vmul.f32 %v27, %v86
  %v99 = vmul.f32 %v28, %v86
  %v100 = vmul.f32 %v29, %v86
  %v101 = vmul.f32 %v30, %v86
  %v102 = vmul.f32 %v31, %v86
  %v103 = vmul.f32 %v32, %v86
  %v104 = vmul.f32 %v33, %v86
  %v105 = vmul.f32 %v34, %v86
  %v106 = vmul.f32 %v35, %v86
  %v107 = vmul.f32 %v36, %v86
  %v108 = vmul.f32 %v37, %v86
  %v109 = vmul.f32 %v38, %v86
  %v110 = vmul.f32 %v39, %v86
  %v111 = vmul.f32 %v40, %v86
  %v112 = vmul.f32 %v41, %v86
  %v113 = vmul.f32 %v42, %v86
  %v114 = vmul.f32 %v43, %v86
  %v115 = vmul.f32 %v44, %v86
  %v116 = vmul.f32 %v45, %v86
  %v117 = vmul.f32 %v46, %v86
  %v118 = vmul.f32 %v47, %v86
  %v119 = vmul.f32 %v48, %v86
  %v120 = vmul.f32 %v49, %v86
  %v121 = vmul.f32 %v50, %v86
  %v122 = vmul.f32 %v51, %v86
  %v123 = vmul.f32 %v52, %v86
  %v124 = vmul.f32 %v53, %v86
  %v125 = vmul.f32 %v54, %v86
  %v126 = vmul.f32 %v55, %v86
  %v127 = vmul.f32 %v56, %v86
  %v128 = vmul.f32 %v57, %v86
  %v129 = vmul.f32 %v58, %v86
  %v130 = vmul.f32 %v59, %v86
  %v131 = vmul.f32 %v60, %v86
  %v132 = vmul.f32 %v61, %v86
  %v133 = vmul.f32 %v62, %v86
  %v134 = vmul.f32 %v63, %v86
  %v135 = vmul.f32 %v64, %v86
  %v136 = vmul.f32 %v65, %v86
  %v137 = vmul.f32 %v66, %v86
  %v138 = vmul.f32 %v67, %v86
  %v139 = vmul.f32 %v68, %v86
  %v140 = vmul.f32 %v69, %v86
  %v141 = vmul.f32 %v70, %v86
  %v142 = vmul.f32 %v71, %v86
  %v143 = vmul.f32 %v72, %v86
  %v144 = vmul.f32 %v73, %v86
  %v145 = vmul.f32 %v74, %v86
  %v146 = vmul.f32 %v75, %v86
  %v147 = vmul.f32 %v76, %v86
  %v148 = vmul.f32 %v77, %v86
  %v149 = vmul.f32 %v78, %v86
  %v150 = vmul.f32 %v79, %v86
  %v151 = vmul.f32 %v80, %v86
  %v152 = vld [vmem:[%s2] sm:$0x1]
  %v154 = vlaneseq
  %v155 = vshrl.u32 %v154, 7
  %v156 = vsub.s32 0, %v155
  %v157 = vrot.slane %v152, %v156
  %v159 = vadd.f32 %v88, %v157
  %v160 = vadd.f32 %v89, %v157
  %v161 = vadd.f32 %v90, %v157
  %v162 = vadd.f32 %v91, %v157
  %v163 = vadd.f32 %v92, %v157
  %v164 = vadd.f32 %v93, %v157
  %v165 = vadd.f32 %v94, %v157
  %v166 = vadd.f32 %v95, %v157
  %v167 = vadd.f32 %v96, %v157
  %v168 = vadd.f32 %v97, %v157
  %v169 = vadd.f32 %v98, %v157
  %v170 = vadd.f32 %v99, %v157
  %v171 = vadd.f32 %v100, %v157
  %v172 = vadd.f32 %v101, %v157
  %v173 = vadd.f32 %v102, %v157
  %v174 = vadd.f32 %v103, %v157
  %v175 = vadd.f32 %v104, %v157
  %v176 = vadd.f32 %v105, %v157
  %v177 = vadd.f32 %v106, %v157
  %v178 = vadd.f32 %v107, %v157
  %v179 = vadd.f32 %v108, %v157
  %v180 = vadd.f32 %v109, %v157
  %v181 = vadd.f32 %v110, %v157
  %v182 = vadd.f32 %v111, %v157
  %v183 = vadd.f32 %v112, %v157
  %v184 = vadd.f32 %v113, %v157
  %v185 = vadd.f32 %v114, %v157
  %v186 = vadd.f32 %v115, %v157
  %v187 = vadd.f32 %v116, %v157
  %v188 = vadd.f32 %v117, %v157
  %v189 = vadd.f32 %v118, %v157
  %v190 = vadd.f32 %v119, %v157
  %v191 = vadd.f32 %v120, %v157
  %v192 = vadd.f32 %v121, %v157
  %v193 = vadd.f32 %v122, %v157
  %v194 = vadd.f32 %v123, %v157
  %v195 = vadd.f32 %v124, %v157
  %v196 = vadd.f32 %v125, %v157
  %v197 = vadd.f32 %v126, %v157
  %v198 = vadd.f32 %v127, %v157
  %v199 = vadd.f32 %v128, %v157
  %v200 = vadd.f32 %v129, %v157
  %v201 = vadd.f32 %v130, %v157
  %v202 = vadd.f32 %v131, %v157
  %v203 = vadd.f32 %v132, %v157
  %v204 = vadd.f32 %v133, %v157
  %v205 = vadd.f32 %v134, %v157
  %v206 = vadd.f32 %v135, %v157
  %v207 = vadd.f32 %v136, %v157
  %v208 = vadd.f32 %v137, %v157
  %v209 = vadd.f32 %v138, %v157
  %v210 = vadd.f32 %v139, %v157
  %v211 = vadd.f32 %v140, %v157
  %v212 = vadd.f32 %v141, %v157
  %v213 = vadd.f32 %v142, %v157
  %v214 = vadd.f32 %v143, %v157
  %v215 = vadd.f32 %v144, %v157
  %v216 = vadd.f32 %v145, %v157
  %v217 = vadd.f32 %v146, %v157
  %v218 = vadd.f32 %v147, %v157
  %v219 = vadd.f32 %v148, %v157
  %v220 = vadd.f32 %v149, %v157
  %v221 = vadd.f32 %v150, %v157
  %v222 = vadd.f32 %v151, %v157
  %v223 = vld [vmem:[%s3] sm:$0xff]
  %v224 = vld [vmem:[%s3 + $0x8] sm:$0xff]
  %v225 = vld [vmem:[%s3 + $0x10] sm:$0xff]
  %v226 = vld [vmem:[%s3 + $0x18] sm:$0xff]
  %v227 = vld [vmem:[%s3 + $0x20] sm:$0xff]
  %v228 = vld [vmem:[%s3 + $0x28] sm:$0xff]
  %v229 = vld [vmem:[%s3 + $0x30] sm:$0xff]
  %v230 = vld [vmem:[%s3 + $0x38] sm:$0xff]
  %v231 = vld [vmem:[%s3 + $0x40] sm:$0xff]
  %v232 = vld [vmem:[%s3 + $0x48] sm:$0xff]
  %v233 = vld [vmem:[%s3 + $0x50] sm:$0xff]
  %v234 = vld [vmem:[%s3 + $0x58] sm:$0xff]
  %v235 = vld [vmem:[%s3 + $0x60] sm:$0xff]
  %v236 = vld [vmem:[%s3 + $0x68] sm:$0xff]
  %v237 = vld [vmem:[%s3 + $0x70] sm:$0xff]
  %v238 = vld [vmem:[%s3 + $0x78] sm:$0xff]
  %v239 = vld [vmem:[%s3 + $0x80] sm:$0xff]
  %v240 = vld [vmem:[%s3 + $0x88] sm:$0xff]
  %v241 = vld [vmem:[%s3 + $0x90] sm:$0xff]
  %v242 = vld [vmem:[%s3 + $0x98] sm:$0xff]
  %v243 = vld [vmem:[%s3 + $0xa0] sm:$0xff]
  %v244 = vld [vmem:[%s3 + $0xa8] sm:$0xff]
  %v245 = vld [vmem:[%s3 + $0xb0] sm:$0xff]
  %v246 = vld [vmem:[%s3 + $0xb8] sm:$0xff]
  %v247 = vld [vmem:[%s3 + $0xc0] sm:$0xff]
  %v248 = vld [vmem:[%s3 + $0xc8] sm:$0xff]
  %v249 = vld [vmem:[%s3 + $0xd0] sm:$0xff]
  %v250 = vld [vmem:[%s3 + $0xd8] sm:$0xff]
  %v251 = vld [vmem:[%s3 + $0xe0] sm:$0xff]
  %v252 = vld [vmem:[%s3 + $0xe8] sm:$0xff]
  %v253 = vld [vmem:[%s3 + $0xf0] sm:$0xff]
  %v254 = vld [vmem:[%s3 + $0xf8] sm:$0xff]
  %v255 = vld [vmem:[%s3 + $0x100] sm:$0xff]
  %v256 = vld [vmem:[%s3 + $0x108] sm:$0xff]
  %v257 = vld [vmem:[%s3 + $0x110] sm:$0xff]
  %v258 = vld [vmem:[%s3 + $0x118] sm:$0xff]
  %v259 = vld [vmem:[%s3 + $0x120] sm:$0xff]
  %v260 = vld [vmem:[%s3 + $0x128] sm:$0xff]
  %v261 = vld [vmem:[%s3 + $0x130] sm:$0xff]
  %v262 = vld [vmem:[%s3 + $0x138] sm:$0xff]
  %v263 = vld [vmem:[%s3 + $0x140] sm:$0xff]
  %v264 = vld [vmem:[%s3 + $0x148] sm:$0xff]
  %v265 = vld [vmem:[%s3 + $0x150] sm:$0xff]
  %v266 = vld [vmem:[%s3 + $0x158] sm:$0xff]
  %v267 = vld [vmem:[%s3 + $0x160] sm:$0xff]
  %v268 = vld [vmem:[%s3 + $0x168] sm:$0xff]
  %v269 = vld [vmem:[%s3 + $0x170] sm:$0xff]
  %v270 = vld [vmem:[%s3 + $0x178] sm:$0xff]
  %v271 = vld [vmem:[%s3 + $0x180] sm:$0xff]
  %v272 = vld [vmem:[%s3 + $0x188] sm:$0xff]
  %v273 = vld [vmem:[%s3 + $0x190] sm:$0xff]
  %v274 = vld [vmem:[%s3 + $0x198] sm:$0xff]
  %v275 = vld [vmem:[%s3 + $0x1a0] sm:$0xff]
  %v276 = vld [vmem:[%s3 + $0x1a8] sm:$0xff]
  %v277 = vld [vmem:[%s3 + $0x1b0] sm:$0xff]
  %v278 = vld [vmem:[%s3 + $0x1b8] sm:$0xff]
  %v279 = vld [vmem:[%s3 + $0x1c0] sm:$0xff]
  %v280 = vld [vmem:[%s3 + $0x1c8] sm:$0xff]
  %v281 = vld [vmem:[%s3 + $0x1d0] sm:$0xff]
  %v282 = vld [vmem:[%s3 + $0x1d8] sm:$0xff]
  %v283 = vld [vmem:[%s3 + $0x1e0] sm:$0xff]
  %v284 = vld [vmem:[%s3 + $0x1e8] sm:$0xff]
  %v285 = vld [vmem:[%s3 + $0x1f0] sm:$0xff]
  %v286 = vld [vmem:[%s3 + $0x1f8] sm:$0xff]
  %v287 = vadd.f32 %v159, %v223
  %v288 = vadd.f32 %v160, %v224
  %v289 = vadd.f32 %v161, %v225
  %v290 = vadd.f32 %v162, %v226
  %v291 = vadd.f32 %v163, %v227
  %v292 = vadd.f32 %v164, %v228
  %v293 = vadd.f32 %v165, %v229
  %v294 = vadd.f32 %v166, %v230
  %v295 = vadd.f32 %v167, %v231
  %v296 = vadd.f32 %v168, %v232
  %v297 = vadd.f32 %v169, %v233
  %v298 = vadd.f32 %v170, %v234
  %v299 = vadd.f32 %v171, %v235
  %v300 = vadd.f32 %v172, %v236
  %v301 = vadd.f32 %v173, %v237
  %v302 = vadd.f32 %v174, %v238
  %v303 = vadd.f32 %v175, %v239
  %v304 = vadd.f32 %v176, %v240
  %v305 = vadd.f32 %v177, %v241
  %v306 = vadd.f32 %v178, %v242
  %v307 = vadd.f32 %v179, %v243
  %v308 = vadd.f32 %v180, %v244
  %v309 = vadd.f32 %v181, %v245
  %v310 = vadd.f32 %v182, %v246
  %v311 = vadd.f32 %v183, %v247
  %v312 = vadd.f32 %v184, %v248
  %v313 = vadd.f32 %v185, %v249
  %v314 = vadd.f32 %v186, %v250
  %v315 = vadd.f32 %v187, %v251
  %v316 = vadd.f32 %v188, %v252
  %v317 = vadd.f32 %v189, %v253
  %v318 = vadd.f32 %v190, %v254
  %v319 = vadd.f32 %v191, %v255
  %v320 = vadd.f32 %v192, %v256
  %v321 = vadd.f32 %v193, %v257
  %v322 = vadd.f32 %v194, %v258
  %v323 = vadd.f32 %v195, %v259
  %v324 = vadd.f32 %v196, %v260
  %v325 = vadd.f32 %v197, %v261
  %v326 = vadd.f32 %v198, %v262
  %v327 = vadd.f32 %v199, %v263
  %v328 = vadd.f32 %v200, %v264
  %v329 = vadd.f32 %v201, %v265
  %v330 = vadd.f32 %v202, %v266
  %v331 = vadd.f32 %v203, %v267
  %v332 = vadd.f32 %v204, %v268
  %v333 = vadd.f32 %v205, %v269
  %v334 = vadd.f32 %v206, %v270
  %v335 = vadd.f32 %v207, %v271
  %v336 = vadd.f32 %v208, %v272
  %v337 = vadd.f32 %v209, %v273
  %v338 = vadd.f32 %v210, %v274
  %v339 = vadd.f32 %v211, %v275
  %v340 = vadd.f32 %v212, %v276
  %v341 = vadd.f32 %v213, %v277
  %v342 = vadd.f32 %v214, %v278
  %v343 = vadd.f32 %v215, %v279
  %v344 = vadd.f32 %v216, %v280
  %v345 = vadd.f32 %v217, %v281
  %v346 = vadd.f32 %v218, %v282
  %v347 = vadd.f32 %v219, %v283
  %v348 = vadd.f32 %v220, %v284
  %v349 = vadd.f32 %v221, %v285
  %v350 = vadd.f32 %v222, %v286
  %v351 = vmax.f32 %v287, 0.0
  %v352 = vmax.f32 %v288, 0.0
  %v353 = vmax.f32 %v289, 0.0
  %v354 = vmax.f32 %v290, 0.0
  %v355 = vmax.f32 %v291, 0.0
  %v356 = vmax.f32 %v292, 0.0
  %v357 = vmax.f32 %v293, 0.0
  %v358 = vmax.f32 %v294, 0.0
  %v359 = vmax.f32 %v295, 0.0
  %v360 = vmax.f32 %v296, 0.0
  %v361 = vmax.f32 %v297, 0.0
  %v362 = vmax.f32 %v298, 0.0
  %v363 = vmax.f32 %v299, 0.0
  %v364 = vmax.f32 %v300, 0.0
  %v365 = vmax.f32 %v301, 0.0
  %v366 = vmax.f32 %v302, 0.0
  %v367 = vmax.f32 %v303, 0.0
  %v368 = vmax.f32 %v304, 0.0
  %v369 = vmax.f32 %v305, 0.0
  %v370 = vmax.f32 %v306, 0.0
  %v371 = vmax.f32 %v307, 0.0
  %v372 = vmax.f32 %v308, 0.0
  %v373 = vmax.f32 %v309, 0.0
  %v374 = vmax.f32 %v310, 0.0
  %v375 = vmax.f32 %v311, 0.0
  %v376 = vmax.f32 %v312, 0.0
  %v377 = vmax.f32 %v313, 0.0
  %v378 = vmax.f32 %v314, 0.0
  %v379 = vmax.f32 %v315, 0.0
  %v380 = vmax.f32 %v316, 0.0
  %v381 = vmax.f32 %v317, 0.0
  %v382 = vmax.f32 %v318, 0.0
  %v383 = vmax.f32 %v319, 0.0
  %v384 = vmax.f32 %v320, 0.0
  %v385 = vmax.f32 %v321, 0.0
  %v386 = vmax.f32 %v322, 0.0
  %v387 = vmax.f32 %v323, 0.0
  %v388 = vmax.f32 %v324, 0.0
  %v389 = vmax.f32 %v325, 0.0
  %v390 = vmax.f32 %v326, 0.0
  %v391 = vmax.f32 %v327, 0.0
  %v392 = vmax.f32 %v328, 0.0
  %v393 = vmax.f32 %v329, 0.0
  %v394 = vmax.f32 %v330, 0.0
  %v395 = vmax.f32 %v331, 0.0
  %v396 = vmax.f32 %v332, 0.0
  %v397 = vmax.f32 %v333, 0.0
  %v398 = vmax.f32 %v334, 0.0
  %v399 = vmax.f32 %v335, 0.0
  %v400 = vmax.f32 %v336, 0.0
  %v401 = vmax.f32 %v337, 0.0
  %v402 = vmax.f32 %v338, 0.0
  %v403 = vmax.f32 %v339, 0.0
  %v404 = vmax.f32 %v340, 0.0
  %v405 = vmax.f32 %v341, 0.0
  %v406 = vmax.f32 %v342, 0.0
  %v407 = vmax.f32 %v343, 0.0
  %v408 = vmax.f32 %v344, 0.0
  %v409 = vmax.f32 %v345, 0.0
  %v410 = vmax.f32 %v346, 0.0
  %v411 = vmax.f32 %v347, 0.0
  %v412 = vmax.f32 %v348, 0.0
  %v413 = vmax.f32 %v349, 0.0
  %v414 = vmax.f32 %v350, 0.0
  %415 = vst [vmem:[%s4] sm:$0xff] %v351
  %416 = vst [vmem:[%s4 + $0x8] sm:$0xff] %v352
  %417 = vst [vmem:[%s4 + $0x10] sm:$0xff] %v353
  %418 = vst [vmem:[%s4 + $0x18] sm:$0xff] %v354
  %419 = vst [vmem:[%s4 + $0x20] sm:$0xff] %v355
  %420 = vst [vmem:[%s4 + $0x28] sm:$0xff] %v356
  %421 = vst [vmem:[%s4 + $0x30] sm:$0xff] %v357
  %422 = vst [vmem:[%s4 + $0x38] sm:$0xff] %v358
  %423 = vst [vmem:[%s4 + $0x40] sm:$0xff] %v359
  %424 = vst [vmem:[%s4 + $0x48] sm:$0xff] %v360
  %425 = vst [vmem:[%s4 + $0x50] sm:$0xff] %v361
  %426 = vst [vmem:[%s4 + $0x58] sm:$0xff] %v362
  %427 = vst [vmem:[%s4 + $0x60] sm:$0xff] %v363
  %428 = vst [vmem:[%s4 + $0x68] sm:$0xff] %v364
  %429 = vst [vmem:[%s4 + $0x70] sm:$0xff] %v365
  %430 = vst [vmem:[%s4 + $0x78] sm:$0xff] %v366
  %431 = vst [vmem:[%s4 + $0x80] sm:$0xff] %v367
  %432 = vst [vmem:[%s4 + $0x88] sm:$0xff] %v368
  %433 = vst [vmem:[%s4 + $0x90] sm:$0xff] %v369
  %434 = vst [vmem:[%s4 + $0x98] sm:$0xff] %v370
  %435 = vst [vmem:[%s4 + $0xa0] sm:$0xff] %v371
  %436 = vst [vmem:[%s4 + $0xa8] sm:$0xff] %v372
  %437 = vst [vmem:[%s4 + $0xb0] sm:$0xff] %v373
  %438 = vst [vmem:[%s4 + $0xb8] sm:$0xff] %v374
  %439 = vst [vmem:[%s4 + $0xc0] sm:$0xff] %v375
  %440 = vst [vmem:[%s4 + $0xc8] sm:$0xff] %v376
  %441 = vst [vmem:[%s4 + $0xd0] sm:$0xff] %v377
  %442 = vst [vmem:[%s4 + $0xd8] sm:$0xff] %v378
  %443 = vst [vmem:[%s4 + $0xe0] sm:$0xff] %v379
  %444 = vst [vmem:[%s4 + $0xe8] sm:$0xff] %v380
  %445 = vst [vmem:[%s4 + $0xf0] sm:$0xff] %v381
  %446 = vst [vmem:[%s4 + $0xf8] sm:$0xff] %v382
  %447 = vst [vmem:[%s4 + $0x100] sm:$0xff] %v383
  %448 = vst [vmem:[%s4 + $0x108] sm:$0xff] %v384
  %449 = vst [vmem:[%s4 + $0x110] sm:$0xff] %v385
  %450 = vst [vmem:[%s4 + $0x118] sm:$0xff] %v386
  %451 = vst [vmem:[%s4 + $0x120] sm:$0xff] %v387
  %452 = vst [vmem:[%s4 + $0x128] sm:$0xff] %v388
  %453 = vst [vmem:[%s4 + $0x130] sm:$0xff] %v389
  %454 = vst [vmem:[%s4 + $0x138] sm:$0xff] %v390
  %455 = vst [vmem:[%s4 + $0x140] sm:$0xff] %v391
  %456 = vst [vmem:[%s4 + $0x148] sm:$0xff] %v392
  %457 = vst [vmem:[%s4 + $0x150] sm:$0xff] %v393
  %458 = vst [vmem:[%s4 + $0x158] sm:$0xff] %v394
  %459 = vst [vmem:[%s4 + $0x160] sm:$0xff] %v395
  %460 = vst [vmem:[%s4 + $0x168] sm:$0xff] %v396
  %461 = vst [vmem:[%s4 + $0x170] sm:$0xff] %v397
  %462 = vst [vmem:[%s4 + $0x178] sm:$0xff] %v398
  %463 = vst [vmem:[%s4 + $0x180] sm:$0xff] %v399
  %464 = vst [vmem:[%s4 + $0x188] sm:$0xff] %v400
  %465 = vst [vmem:[%s4 + $0x190] sm:$0xff] %v401
  %466 = vst [vmem:[%s4 + $0x198] sm:$0xff] %v402
  %467 = vst [vmem:[%s4 + $0x1a0] sm:$0xff] %v403
  %468 = vst [vmem:[%s4 + $0x1a8] sm:$0xff] %v404
  %469 = vst [vmem:[%s4 + $0x1b0] sm:$0xff] %v405
  %470 = vst [vmem:[%s4 + $0x1b8] sm:$0xff] %v406
  %471 = vst [vmem:[%s4 + $0x1c0] sm:$0xff] %v407
  %472 = vst [vmem:[%s4 + $0x1c8] sm:$0xff] %v408
  %473 = vst [vmem:[%s4 + $0x1d0] sm:$0xff] %v409
  %474 = vst [vmem:[%s4 + $0x1d8] sm:$0xff] %v410
  %475 = vst [vmem:[%s4 + $0x1e0] sm:$0xff] %v411
  %476 = vst [vmem:[%s4 + $0x1e8] sm:$0xff] %v412
  %477 = vst [vmem:[%s4 + $0x1f0] sm:$0xff] %v413
  %478 = vst [vmem:[%s4 + $0x1f8] sm:$0xff] %v414
  // Predicated region
  $region18: #{residual_forward.7} parent=0 // pred_check
    _
  $region19: #{residual_forward.7} parent=0 // pred_check_branch
    %480 = sbr.rel (0) target = $region21
  $region20: #{residual_forward.7} parent=0 // pred_region
    _
  $region21: #{residual_forward.7} parent=0 // pred_fallthru
    _
  // Predicated region
  $region22: #{residual_forward.7} parent=0 // pred_check
    _
  $region23: #{residual_forward.7} parent=0 // pred_check_branch
    %482 = sbr.rel (0) target = $region25
  $region24: #{residual_forward.7} parent=0 // pred_region
    _
  $region25: #{residual_forward.7} parent=0 // pred_fallthru
    _

</llo_original>
